<compile_context>
chip_gen: v5e
topology: v5e:2x2
jax: 0.10.0
libtpu: 0.0.40
codegen_flags: <defaults>
</compile_context>

<pallas_src>
import jax
import jax.numpy as jnp
from jax import lax
from jax.experimental import pallas as pl
from jax.experimental.pallas import tpu as pltpu

# ---------------- model hyper-parameters (small, consistent with the module) --
BATCH = 2
SEQ = 8
D_MODEL = 32
N_HEADS = 4
D_HEAD = D_MODEL // N_HEADS
D_FF = 64
N_LAYERS = 2
EPS = 1e-6


# ---------------- in-kernel helpers ------------------------------------------
def _layernorm(x, a, b):
    """Matches the PyTorch LayerNorm above: unbiased std (divide by D-1)."""
    d = x.shape[-1]
    mean = jnp.mean(x, axis=-1, keepdims=True)
    xc = x - mean
    var_unbiased = jnp.sum(xc * xc, axis=-1, keepdims=True) / (d - 1)
    return a * (xc * lax.rsqrt(var_unbiased + EPS)) + b


# ---------------- fused Pallas kernel -----------------------------------------
def fused_encoder_kernel(
    x_ref,       # (B*S, D)        activations, whole batch
    bias_ref,    # (B*S, B*S)      additive attention bias (block-diag + key mask)
    wqkv_ref,    # (L, D, 3D)      fused Q|K|V projection weights
    bqkv_ref,    # (L, 1, 3D)
    wo_ref,      # (L, D, D)
    bo_ref,      # (L, 1, D)
    ln1a_ref, ln1b_ref,   # (L, 1, D)
    w1_ref,      # (L, D, D_FF)
    b1_ref,      # (L, 1, D_FF)
    w2_ref,      # (L, D_FF, D)
    b2_ref,      # (L, 1, D)
    ln2a_ref, ln2b_ref,   # (L, 1, D)
    fna_ref, fnb_ref,     # (1, D)  final LayerNorm
    o_ref,       # (B*S, D)
):
    x = x_ref[...]
    bias = bias_ref[...]
    scale = 1.0 / jnp.sqrt(jnp.float32(D_HEAD))

    for l in range(N_LAYERS):  # static unrolled loop over layers (weights resident)
        # ---- self-attention sublayer: x + Attn(LN(x)) ----
        xn = _layernorm(x, ln1a_ref[l], ln1b_ref[l])
        qkv = jnp.dot(xn, wqkv_ref[l], preferred_element_type=jnp.float32) + bqkv_ref[l]
        q = qkv[:, 0:D_MODEL]
        k = qkv[:, D_MODEL:2 * D_MODEL]
        v = qkv[:, 2 * D_MODEL:3 * D_MODEL]

        head_outs = []
        for h in range(N_HEADS):  # static; each head attends over the WHOLE batch at once
            sl = slice(h * D_HEAD, (h + 1) * D_HEAD)
            s = jnp.dot(q[:, sl], k[:, sl].T,
                        preferred_element_type=jnp.float32) * scale   # (B*S, B*S)
            s = s + bias                                              # masks keys + batch blocks
            s_max = jnp.max(s, axis=-1, keepdims=True)
            e = jnp.exp(s - s_max)
            denom = jnp.sum(e, axis=-1, keepdims=True)
            p = e * pl.reciprocal(denom, approx=True)                 # EUP slot
            head_outs.append(jnp.dot(p, v[:, sl],
                                     preferred_element_type=jnp.float32))
        attn = jnp.concatenate(head_outs, axis=-1)                    # (B*S, D)
        attn = jnp.dot(attn, wo_ref[l], preferred_element_type=jnp.float32) + bo_ref[l]
        x = x + attn  # dropout == identity

        # ---- feed-forward sublayer: x + FFN(LN(x)) ----
        xn2 = _layernorm(x, ln2a_ref[l], ln2b_ref[l])
        h1 = jnp.dot(xn2, w1_ref[l], preferred_element_type=jnp.float32) + b1_ref[l]
        h1 = jnp.maximum(h1, 0.0)
        x = x + jnp.dot(h1, w2_ref[l], preferred_element_type=jnp.float32) + b2_ref[l]

    # ---- final LayerNorm ----
    o_ref[...] = _layernorm(x, fna_ref[...], fnb_ref[...])


# ---------------- wrappers -----------------------------------------------------
def pack_params(layer_params):
    """Stack per-layer weights along a leading L axis; fuse Q|K|V."""
    stk = lambda name: jnp.stack([p[name] for p in layer_params], axis=0)
    wqkv = jnp.stack(
        [jnp.concatenate([p["wq"], p["wk"], p["wv"]], axis=1) for p in layer_params], axis=0)
    bqkv = jnp.stack(
        [jnp.concatenate([p["bq"], p["bk"], p["bv"]], axis=1) for p in layer_params], axis=0)
    return dict(
        wqkv=wqkv, bqkv=bqkv,
        wo=stk("wo"), bo=stk("bo"),
        ln1_a=stk("ln1_a"), ln1_b=stk("ln1_b"),
        w1=stk("w1"), b1=stk("b1"),
        w2=stk("w2"), b2=stk("b2"),
        ln2_a=stk("ln2_a"), ln2_b=stk("ln2_b"),
    )


def make_attn_bias(mask):
    """(B,1,S) 0/1 key mask -> (B*S, B*S) additive bias.

    -1e9 where the key position is padded OR the query/key belong to different
    batch elements (so whole-batch attention stays block-diagonal); 0 otherwise.
    """
    B, _, S = mask.shape
    key_valid = (mask[:, 0, :] != 0).reshape(B * S)        # flattened key validity
    row_b = jnp.repeat(jnp.arange(B), S)                   # batch id per flattened row
    same_batch = row_b[:, None] == row_b[None, :]
    ok = same_batch & key_valid[None, :]
    return jnp.where(ok, 0.0, -1e9).astype(jnp.float32)


def encoder_forward(x, mask, layer_params, norm_a, norm_b):
    B, S, D = x.shape
    packed = pack_params(layer_params)
    bias = make_attn_bias(mask)
    out = pl.pallas_call(
        fused_encoder_kernel,
        out_shape=jax.ShapeDtypeStruct((B * S, D), jnp.float32),
        # Whole arrays live in VMEM (total footprint ~< 200 KB). Explicit limit
        # left generous; re-derive block sizes against 64 MiB if scaled up (v7x).
        compiler_params=pltpu.CompilerParams(vmem_limit_bytes=32 * 1024 * 1024),
    )(
        x.reshape(B * S, D), bias,
        packed["wqkv"], packed["bqkv"], packed["wo"], packed["bo"],
        packed["ln1_a"], packed["ln1_b"],
        packed["w1"], packed["b1"], packed["w2"], packed["b2"],
        packed["ln2_a"], packed["ln2_b"],
        norm_a, norm_b,
    )
    return out.reshape(B, S, D)


# ---------------- pure-JAX reference (same math as the PyTorch module) ---------
def _ref_layernorm(x, a, b):
    d = x.shape[-1]
    mean = jnp.mean(x, axis=-1, keepdims=True)
    xc = x - mean
    var = jnp.sum(xc * xc, axis=-1, keepdims=True) / (d - 1)
    return a * (xc / jnp.sqrt(var + EPS)) + b


def _ref_layer(x, mask, p):
    out = []
    for bidx in range(x.shape[0]):
        xb = x[bidx]
        mb = mask[bidx]
        xn = _ref_layernorm(xb, p["ln1_a"], p["ln1_b"])
        q = xn @ p["wq"] + p["bq"]
        k = xn @ p["wk"] + p["bk"]
        v = xn @ p["wv"] + p["bv"]
        scale = 1.0 / jnp.sqrt(jnp.float32(D_HEAD))
        heads = []
        for h in range(N_HEADS):
            sl = slice(h * D_HEAD, (h + 1) * D_HEAD)
            s = (q[:, sl] @ k[:, sl].T) * scale
            s = jnp.where(mb == 0, -1e9, s)
            p_ = jax.nn.softmax(s, axis=-1)
            heads.append(p_ @ v[:, sl])
        attn = jnp.concatenate(heads, axis=-1) @ p["wo"] + p["bo"]
        xb = xb + attn
        xn2 = _ref_layernorm(xb, p["ln2_a"], p["ln2_b"])
        ff = jnp.maximum(xn2 @ p["w1"] + p["b1"], 0.0) @ p["w2"] + p["b2"]
        out.append(xb + ff)
    return jnp.stack(out, axis=0)


def _ref_encoder(x, mask, layer_params, norm_a, norm_b):
    for p in layer_params:
        x = _ref_layer(x, mask, p)
    return _ref_layernorm(x, norm_a, norm_b)


# ---------------- parameter init ----------------------------------------------
def make_params(key):
    layer_params = []
    for _ in range(N_LAYERS):
        ks = jax.random.split(key, 9)
        key = ks[0]
        p = {
            "wq": 0.05 * jax.random.normal(ks[1], (D_MODEL, D_MODEL), jnp.float32),
            "bq": 0.01 * jax.random.normal(ks[2], (1, D_MODEL), jnp.float32),
            "wk": 0.05 * jax.random.normal(ks[3], (D_MODEL, D_MODEL), jnp.float32),
            "bk": jnp.zeros((1, D_MODEL), jnp.float32),
            "wv": 0.05 * jax.random.normal(ks[4], (D_MODEL, D_MODEL), jnp.float32),
            "bv": jnp.zeros((1, D_MODEL), jnp.float32),
            "wo": 0.05 * jax.random.normal(ks[5], (D_MODEL, D_MODEL), jnp.float32),
            "bo": 0.01 * jax.random.normal(ks[6], (1, D_MODEL), jnp.float32),
            "ln1_a": jnp.ones((1, D_MODEL), jnp.float32),
            "ln1_b": jnp.zeros((1, D_MODEL), jnp.float32),
            "w1": 0.05 * jax.random.normal(ks[7], (D_MODEL, D_FF), jnp.float32),
            "b1": jnp.zeros((1, D_FF), jnp.float32),
            "w2": 0.05 * jax.random.normal(ks[8], (D_FF, D_MODEL), jnp.float32),
            "b2": jnp.zeros((1, D_MODEL), jnp.float32),
            "ln2_a": jnp.ones((1, D_MODEL), jnp.float32),
            "ln2_b": jnp.zeros((1, D_MODEL), jnp.float32),
        }
        layer_params.append(p)
    norm_a = jnp.ones((1, D_MODEL), jnp.float32)
    norm_b = jnp.zeros((1, D_MODEL), jnp.float32)
    return layer_params, norm_a, norm_b, key


# ---------------- main ----------------------------------------------------------
if __name__ == "__main__":
    key = jax.random.PRNGKey(0)
    layer_params, norm_a, norm_b, key = make_params(key)

    key, kx = jax.random.split(key)
    x = jax.random.normal(kx, (BATCH, SEQ, D_MODEL), jnp.float32)
    # mask: (B, 1, S); last two key positions are padding (mask == 0)
    mask = (jnp.arange(SEQ) < SEQ - 2).astype(jnp.float32)
    mask = jnp.broadcast_to(mask[None, None, :], (BATCH, 1, SEQ))

    out = encoder_forward(x, mask, layer_params, norm_a, norm_b)
    out = jax.block_until_ready(out)

    ref = _ref_encoder(x, mask, layer_params, norm_a, norm_b)
    ref = jax.block_until_ready(ref)
    assert out.shape == (BATCH, SEQ, D_MODEL)
    assert jnp.allclose(out, ref, atol=1e-2, rtol=1e-2)

    print("KERNEL_OK")
</pallas_src>

<mosaic_0001>
module attributes {stable_mosaic.version = 11 : i64} {
  func.func @fused_encoder_kernel(%arg0: memref<16x32xf32, #tpu.memory_space<vmem>>, %arg1: memref<16x16xf32, #tpu.memory_space<vmem>>, %arg2: memref<2x32x96xf32, #tpu.memory_space<vmem>>, %arg3: memref<2x1x96xf32, #tpu.memory_space<vmem>>, %arg4: memref<2x32x32xf32, #tpu.memory_space<vmem>>, %arg5: memref<2x1x32xf32, #tpu.memory_space<vmem>>, %arg6: memref<2x1x32xf32, #tpu.memory_space<vmem>>, %arg7: memref<2x1x32xf32, #tpu.memory_space<vmem>>, %arg8: memref<2x32x64xf32, #tpu.memory_space<vmem>>, %arg9: memref<2x1x64xf32, #tpu.memory_space<vmem>>, %arg10: memref<2x64x32xf32, #tpu.memory_space<vmem>>, %arg11: memref<2x1x32xf32, #tpu.memory_space<vmem>>, %arg12: memref<2x1x32xf32, #tpu.memory_space<vmem>>, %arg13: memref<2x1x32xf32, #tpu.memory_space<vmem>>, %arg14: memref<1x32xf32, #tpu.memory_space<vmem>>, %arg15: memref<1x32xf32, #tpu.memory_space<vmem>>, %arg16: memref<16x32xf32, #tpu.memory_space<vmem>>) attributes {dimension_semantics = [], scalar_prefetch = 0 : i64, scratch_operands = 0 : i64, tpu.core_type = #tpu.core_type<tc>} {
    %c0 = arith.constant 0 : index
    %c0_0 = arith.constant 0 : index
    %0 = vector.load %arg0[%c0, %c0_0] : memref<16x32xf32, #tpu.memory_space<vmem>>, vector<16x32xf32>
    %c0_1 = arith.constant 0 : index
    %c0_2 = arith.constant 0 : index
    %1 = vector.load %arg1[%c0_1, %c0_2] : memref<16x16xf32, #tpu.memory_space<vmem>>, vector<16x16xf32>
    %cst = arith.constant 8.000000e+00 : f32
    %2 = math.sqrt %cst : f32
    %cst_3 = arith.constant 1.000000e+00 : f32
    %3 = arith.divf %cst_3, %2 : f32
    %c0_4 = arith.constant 0 : index
    %c0_5 = arith.constant 0 : index
    %c0_6 = arith.constant 0 : index
    %4 = vector.load %arg6[%c0_4, %c0_5, %c0_6] : memref<2x1x32xf32, #tpu.memory_space<vmem>>, vector<1x1x32xf32>
    %5 = vector.shape_cast %4 : vector<1x1x32xf32> to vector<1x32xf32>
    %c0_7 = arith.constant 0 : index
    %c0_8 = arith.constant 0 : index
    %c0_9 = arith.constant 0 : index
    %6 = vector.load %arg7[%c0_7, %c0_8, %c0_9] : memref<2x1x32xf32, #tpu.memory_space<vmem>>, vector<1x1x32xf32>
    %7 = vector.shape_cast %6 : vector<1x1x32xf32> to vector<1x32xf32>
    %cst_10 = arith.constant dense<0.000000e+00> : vector<16xf32>
    %8 = vector.multi_reduction <add>, %0, %cst_10 [1] : vector<16x32xf32> to vector<16xf32>
    %9 = vector.shape_cast %8 : vector<16xf32> to vector<16x1xf32>
    %cst_11 = arith.constant 3.200000e+01 : f32
    %10 = vector.broadcast %cst_11 : f32 to vector<16x1xf32>
    %11 = arith.divf %9, %10 : vector<16x1xf32>
    %12 = vector.broadcast %11 : vector<16x1xf32> to vector<16x32xf32>
    %13 = arith.subf %0, %12 : vector<16x32xf32>
    %14 = arith.mulf %13, %13 : vector<16x32xf32>
    %cst_12 = arith.constant dense<0.000000e+00> : vector<16xf32>
    %15 = vector.multi_reduction <add>, %14, %cst_12 [1] : vector<16x32xf32> to vector<16xf32>
    %16 = vector.shape_cast %15 : vector<16xf32> to vector<16x1xf32>
    %cst_13 = arith.constant 3.100000e+01 : f32
    %17 = vector.broadcast %cst_13 : f32 to vector<16x1xf32>
    %18 = arith.divf %16, %17 : vector<16x1xf32>
    %cst_14 = arith.constant 9.99999997E-7 : f32
    %19 = vector.broadcast %cst_14 : f32 to vector<16x1xf32>
    %20 = arith.addf %18, %19 : vector<16x1xf32>
    %21 = math.rsqrt %20 : vector<16x1xf32>
    %22 = vector.broadcast %21 : vector<16x1xf32> to vector<16x32xf32>
    %23 = arith.mulf %13, %22 : vector<16x32xf32>
    %24 = vector.broadcast %5 : vector<1x32xf32> to vector<16x32xf32>
    %25 = arith.mulf %24, %23 : vector<16x32xf32>
    %26 = vector.broadcast %7 : vector<1x32xf32> to vector<16x32xf32>
    %27 = arith.addf %25, %26 : vector<16x32xf32>
    %c0_15 = arith.constant 0 : index
    %c0_16 = arith.constant 0 : index
    %c0_17 = arith.constant 0 : index
    %28 = vector.load %arg2[%c0_15, %c0_16, %c0_17] : memref<2x32x96xf32, #tpu.memory_space<vmem>>, vector<1x32x96xf32>
    %29 = vector.shape_cast %28 : vector<1x32x96xf32> to vector<32x96xf32>
    %cst_18 = arith.constant dense<0.000000e+00> : vector<16x96xf32>
    %30 = tpu.matmul %27, %29, %cst_18 {dimension_numbers = #tpu.dot_dimension_numbers<[1], [0], [0], [1], [0, 0, 1, 1], [], []>} : vector<16x32xf32>, vector<32x96xf32>, vector<16x96xf32> -> vector<16x96xf32>
    %c0_19 = arith.constant 0 : index
    %c0_20 = arith.constant 0 : index
    %c0_21 = arith.constant 0 : index
    %31 = vector.load %arg3[%c0_19, %c0_20, %c0_21] : memref<2x1x96xf32, #tpu.memory_space<vmem>>, vector<1x1x96xf32>
    %32 = vector.shape_cast %31 : vector<1x1x96xf32> to vector<1x96xf32>
    %33 = vector.broadcast %32 : vector<1x96xf32> to vector<16x96xf32>
    %34 = arith.addf %30, %33 : vector<16x96xf32>
    %35 = vector.extract_strided_slice %34 {offsets = [0, 0], sizes = [16, 32], strides = [1, 1]} : vector<16x96xf32> to vector<16x32xf32>
    %36 = vector.extract_strided_slice %34 {offsets = [0, 32], sizes = [16, 32], strides = [1, 1]} : vector<16x96xf32> to vector<16x32xf32>
    %37 = vector.extract_strided_slice %34 {offsets = [0, 64], sizes = [16, 32], strides = [1, 1]} : vector<16x96xf32> to vector<16x32xf32>
    %38 = vector.extract_strided_slice %35 {offsets = [0, 0], sizes = [16, 8], strides = [1, 1]} : vector<16x32xf32> to vector<16x8xf32>
    %39 = vector.extract_strided_slice %36 {offsets = [0, 0], sizes = [16, 8], strides = [1, 1]} : vector<16x32xf32> to vector<16x8xf32>
    %40 = tpu.transpose %39, [1, 0] : vector<16x8xf32> -> vector<8x16xf32>
    %cst_22 = arith.constant dense<0.000000e+00> : vector<16x16xf32>
    %41 = tpu.matmul %38, %40, %cst_22 {dimension_numbers = #tpu.dot_dimension_numbers<[1], [0], [0], [1], [0, 0, 1, 1], [], []>} : vector<16x8xf32>, vector<8x16xf32>, vector<16x16xf32> -> vector<16x16xf32>
    %42 = vector.broadcast %3 : f32 to vector<16x16xf32>
    %43 = arith.mulf %41, %42 : vector<16x16xf32>
    %44 = arith.addf %43, %1 : vector<16x16xf32>
    %cst_23 = arith.constant dense<0xFF800000> : vector<16xf32>
    %45 = vector.multi_reduction <maximumf>, %44, %cst_23 [1] : vector<16x16xf32> to vector<16xf32>
    %46 = vector.shape_cast %45 : vector<16xf32> to vector<16x1xf32>
    %47 = vector.broadcast %46 : vector<16x1xf32> to vector<16x16xf32>
    %48 = arith.subf %44, %47 : vector<16x16xf32>
    %49 = math.exp %48 : vector<16x16xf32>
    %cst_24 = arith.constant dense<0.000000e+00> : vector<16xf32>
    %50 = vector.multi_reduction <add>, %49, %cst_24 [1] : vector<16x16xf32> to vector<16xf32>
    %51 = vector.shape_cast %50 : vector<16xf32> to vector<16x1xf32>
    %52 = tpu.reciprocal %51 {approx = true} : vector<16x1xf32> -> vector<16x1xf32>
    %53 = vector.broadcast %52 : vector<16x1xf32> to vector<16x16xf32>
    %54 = arith.mulf %49, %53 : vector<16x16xf32>
    %55 = vector.extract_strided_slice %37 {offsets = [0, 0], sizes = [16, 8], strides = [1, 1]} : vector<16x32xf32> to vector<16x8xf32>
    %cst_25 = arith.constant dense<0.000000e+00> : vector<16x8xf32>
    %56 = tpu.matmul %54, %55, %cst_25 {dimension_numbers = #tpu.dot_dimension_numbers<[1], [0], [0], [1], [0, 0, 1, 1], [], []>} : vector<16x16xf32>, vector<16x8xf32>, vector<16x8xf32> -> vector<16x8xf32>
    %57 = vector.extract_strided_slice %35 {offsets = [0, 8], sizes = [16, 8], strides = [1, 1]} : vector<16x32xf32> to vector<16x8xf32>
    %58 = vector.extract_strided_slice %36 {offsets = [0, 8], sizes = [16, 8], strides = [1, 1]} : vector<16x32xf32> to vector<16x8xf32>
    %59 = tpu.transpose %58, [1, 0] : vector<16x8xf32> -> vector<8x16xf32>
    %cst_26 = arith.constant dense<0.000000e+00> : vector<16x16xf32>
    %60 = tpu.matmul %57, %59, %cst_26 {dimension_numbers = #tpu.dot_dimension_numbers<[1], [0], [0], [1], [0, 0, 1, 1], [], []>} : vector<16x8xf32>, vector<8x16xf32>, vector<16x16xf32> -> vector<16x16xf32>
    %61 = vector.broadcast %3 : f32 to vector<16x16xf32>
    %62 = arith.mulf %60, %61 : vector<16x16xf32>
    %63 = arith.addf %62, %1 : vector<16x16xf32>
    %cst_27 = arith.constant dense<0xFF800000> : vector<16xf32>
    %64 = vector.multi_reduction <maximumf>, %63, %cst_27 [1] : vector<16x16xf32> to vector<16xf32>
    %65 = vector.shape_cast %64 : vector<16xf32> to vector<16x1xf32>
    %66 = vector.broadcast %65 : vector<16x1xf32> to vector<16x16xf32>
    %67 = arith.subf %63, %66 : vector<16x16xf32>
    %68 = math.exp %67 : vector<16x16xf32>
    %cst_28 = arith.constant dense<0.000000e+00> : vector<16xf32>
    %69 = vector.multi_reduction <add>, %68, %cst_28 [1] : vector<16x16xf32> to vector<16xf32>
    %70 = vector.shape_cast %69 : vector<16xf32> to vector<16x1xf32>
    %71 = tpu.reciprocal %70 {approx = true} : vector<16x1xf32> -> vector<16x1xf32>
    %72 = vector.broadcast %71 : vector<16x1xf32> to vector<16x16xf32>
    %73 = arith.mulf %68, %72 : vector<16x16xf32>
    %74 = vector.extract_strided_slice %37 {offsets = [0, 8], sizes = [16, 8], strides = [1, 1]} : vector<16x32xf32> to vector<16x8xf32>
    %cst_29 = arith.constant dense<0.000000e+00> : vector<16x8xf32>
    %75 = tpu.matmul %73, %74, %cst_29 {dimension_numbers = #tpu.dot_dimension_numbers<[1], [0], [0], [1], [0, 0, 1, 1], [], []>} : vector<16x16xf32>, vector<16x8xf32>, vector<16x8xf32> -> vector<16x8xf32>
    %76 = vector.extract_strided_slice %35 {offsets = [0, 16], sizes = [16, 8], strides = [1, 1]} : vector<16x32xf32> to vector<16x8xf32>
    %77 = vector.extract_strided_slice %36 {offsets = [0, 16], sizes = [16, 8], strides = [1, 1]} : vector<16x32xf32> to vector<16x8xf32>
    %78 = tpu.transpose %77, [1, 0] : vector<16x8xf32> -> vector<8x16xf32>
    %cst_30 = arith.constant dense<0.000000e+00> : vector<16x16xf32>
    %79 = tpu.matmul %76, %78, %cst_30 {dimension_numbers = #tpu.dot_dimension_numbers<[1], [0], [0], [1], [0, 0, 1, 1], [], []>} : vector<16x8xf32>, vector<8x16xf32>, vector<16x16xf32> -> vector<16x16xf32>
    %80 = vector.broadcast %3 : f32 to vector<16x16xf32>
    %81 = arith.mulf %79, %80 : vector<16x16xf32>
    %82 = arith.addf %81, %1 : vector<16x16xf32>
    %cst_31 = arith.constant dense<0xFF800000> : vector<16xf32>
    %83 = vector.multi_reduction <maximumf>, %82, %cst_31 [1] : vector<16x16xf32> to vector<16xf32>
    %84 = vector.shape_cast %83 : vector<16xf32> to vector<16x1xf32>
    %85 = vector.broadcast %84 : vector<16x1xf32> to vector<16x16xf32>
    %86 = arith.subf %82, %85 : vector<16x16xf32>
    %87 = math.exp %86 : vector<16x16xf32>
    %cst_32 = arith.constant dense<0.000000e+00> : vector<16xf32>
    %88 = vector.multi_reduction <add>, %87, %cst_32 [1] : vector<16x16xf32> to vector<16xf32>
    %89 = vector.shape_cast %88 : vector<16xf32> to vector<16x1xf32>
    %90 = tpu.reciprocal %89 {approx = true} : vector<16x1xf32> -> vector<16x1xf32>
    %91 = vector.broadcast %90 : vector<16x1xf32> to vector<16x16xf32>
    %92 = arith.mulf %87, %91 : vector<16x16xf32>
    %93 = vector.extract_strided_slice %37 {offsets = [0, 16], sizes = [16, 8], strides = [1, 1]} : vector<16x32xf32> to vector<16x8xf32>
    %cst_33 = arith.constant dense<0.000000e+00> : vector<16x8xf32>
    %94 = tpu.matmul %92, %93, %cst_33 {dimension_numbers = #tpu.dot_dimension_numbers<[1], [0], [0], [1], [0, 0, 1, 1], [], []>} : vector<16x16xf32>, vector<16x8xf32>, vector<16x8xf32> -> vector<16x8xf32>
    %95 = vector.extract_strided_slice %35 {offsets = [0, 24], sizes = [16, 8], strides = [1, 1]} : vector<16x32xf32> to vector<16x8xf32>
    %96 = vector.extract_strided_slice %36 {offsets = [0, 24], sizes = [16, 8], strides = [1, 1]} : vector<16x32xf32> to vector<16x8xf32>
    %97 = tpu.transpose %96, [1, 0] : vector<16x8xf32> -> vector<8x16xf32>
    %cst_34 = arith.constant dense<0.000000e+00> : vector<16x16xf32>
    %98 = tpu.matmul %95, %97, %cst_34 {dimension_numbers = #tpu.dot_dimension_numbers<[1], [0], [0], [1], [0, 0, 1, 1], [], []>} : vector<16x8xf32>, vector<8x16xf32>, vector<16x16xf32> -> vector<16x16xf32>
    %99 = vector.broadcast %3 : f32 to vector<16x16xf32>
    %100 = arith.mulf %98, %99 : vector<16x16xf32>
    %101 = arith.addf %100, %1 : vector<16x16xf32>
    %cst_35 = arith.constant dense<0xFF800000> : vector<16xf32>
    %102 = vector.multi_reduction <maximumf>, %101, %cst_35 [1] : vector<16x16xf32> to vector<16xf32>
    %103 = vector.shape_cast %102 : vector<16xf32> to vector<16x1xf32>
    %104 = vector.broadcast %103 : vector<16x1xf32> to vector<16x16xf32>
    %105 = arith.subf %101, %104 : vector<16x16xf32>
    %106 = math.exp %105 : vector<16x16xf32>
    %cst_36 = arith.constant dense<0.000000e+00> : vector<16xf32>
    %107 = vector.multi_reduction <add>, %106, %cst_36 [1] : vector<16x16xf32> to vector<16xf32>
    %108 = vector.shape_cast %107 : vector<16xf32> to vector<16x1xf32>
    %109 = tpu.reciprocal %108 {approx = true} : vector<16x1xf32> -> vector<16x1xf32>
    %110 = vector.broadcast %109 : vector<16x1xf32> to vector<16x16xf32>
    %111 = arith.mulf %106, %110 : vector<16x16xf32>
    %112 = vector.extract_strided_slice %37 {offsets = [0, 24], sizes = [16, 8], strides = [1, 1]} : vector<16x32xf32> to vector<16x8xf32>
    %cst_37 = arith.constant dense<0.000000e+00> : vector<16x8xf32>
    %113 = tpu.matmul %111, %112, %cst_37 {dimension_numbers = #tpu.dot_dimension_numbers<[1], [0], [0], [1], [0, 0, 1, 1], [], []>} : vector<16x16xf32>, vector<16x8xf32>, vector<16x8xf32> -> vector<16x8xf32>
    %114 = tpu.concatenate %56, %75, %94, %113 in 1 : vector<16x8xf32>, vector<16x8xf32>, vector<16x8xf32>, vector<16x8xf32> -> vector<16x32xf32>
    %c0_38 = arith.constant 0 : index
    %c0_39 = arith.constant 0 : index
    %c0_40 = arith.constant 0 : index
    %115 = vector.load %arg4[%c0_38, %c0_39, %c0_40] : memref<2x32x32xf32, #tpu.memory_space<vmem>>, vector<1x32x32xf32>
    %116 = vector.shape_cast %115 : vector<1x32x32xf32> to vector<32x32xf32>
    %cst_41 = arith.constant dense<0.000000e+00> : vector<16x32xf32>
    %117 = tpu.matmul %114, %116, %cst_41 {dimension_numbers = #tpu.dot_dimension_numbers<[1], [0], [0], [1], [0, 0, 1, 1], [], []>} : vector<16x32xf32>, vector<32x32xf32>, vector<16x32xf32> -> vector<16x32xf32>
    %c0_42 = arith.constant 0 : index
    %c0_43 = arith.constant 0 : index
    %c0_44 = arith.constant 0 : index
    %118 = vector.load %arg5[%c0_42, %c0_43, %c0_44] : memref<2x1x32xf32, #tpu.memory_space<vmem>>, vector<1x1x32xf32>
    %119 = vector.shape_cast %118 : vector<1x1x32xf32> to vector<1x32xf32>
    %120 = vector.broadcast %119 : vector<1x32xf32> to vector<16x32xf32>
    %121 = arith.addf %117, %120 : vector<16x32xf32>
    %122 = arith.addf %0, %121 : vector<16x32xf32>
    %c0_45 = arith.constant 0 : index
    %c0_46 = arith.constant 0 : index
    %c0_47 = arith.constant 0 : index
    %123 = vector.load %arg12[%c0_45, %c0_46, %c0_47] : memref<2x1x32xf32, #tpu.memory_space<vmem>>, vector<1x1x32xf32>
    %124 = vector.shape_cast %123 : vector<1x1x32xf32> to vector<1x32xf32>
    %c0_48 = arith.constant 0 : index
    %c0_49 = arith.constant 0 : index
    %c0_50 = arith.constant 0 : index
    %125 = vector.load %arg13[%c0_48, %c0_49, %c0_50] : memref<2x1x32xf32, #tpu.memory_space<vmem>>, vector<1x1x32xf32>
    %126 = vector.shape_cast %125 : vector<1x1x32xf32> to vector<1x32xf32>
    %cst_51 = arith.constant dense<0.000000e+00> : vector<16xf32>
    %127 = vector.multi_reduction <add>, %122, %cst_51 [1] : vector<16x32xf32> to vector<16xf32>
    %128 = vector.shape_cast %127 : vector<16xf32> to vector<16x1xf32>
    %cst_52 = arith.constant 3.200000e+01 : f32
    %129 = vector.broadcast %cst_52 : f32 to vector<16x1xf32>
    %130 = arith.divf %128, %129 : vector<16x1xf32>
    %131 = vector.broadcast %130 : vector<16x1xf32> to vector<16x32xf32>
    %132 = arith.subf %122, %131 : vector<16x32xf32>
    %133 = arith.mulf %132, %132 : vector<16x32xf32>
    %cst_53 = arith.constant dense<0.000000e+00> : vector<16xf32>
    %134 = vector.multi_reduction <add>, %133, %cst_53 [1] : vector<16x32xf32> to vector<16xf32>
    %135 = vector.shape_cast %134 : vector<16xf32> to vector<16x1xf32>
    %cst_54 = arith.constant 3.100000e+01 : f32
    %136 = vector.broadcast %cst_54 : f32 to vector<16x1xf32>
    %137 = arith.divf %135, %136 : vector<16x1xf32>
    %cst_55 = arith.constant 9.99999997E-7 : f32
    %138 = vector.broadcast %cst_55 : f32 to vector<16x1xf32>
    %139 = arith.addf %137, %138 : vector<16x1xf32>
    %140 = math.rsqrt %139 : vector<16x1xf32>
    %141 = vector.broadcast %140 : vector<16x1xf32> to vector<16x32xf32>
    %142 = arith.mulf %132, %141 : vector<16x32xf32>
    %143 = vector.broadcast %124 : vector<1x32xf32> to vector<16x32xf32>
    %144 = arith.mulf %143, %142 : vector<16x32xf32>
    %145 = vector.broadcast %126 : vector<1x32xf32> to vector<16x32xf32>
    %146 = arith.addf %144, %145 : vector<16x32xf32>
    %c0_56 = arith.constant 0 : index
    %c0_57 = arith.constant 0 : index
    %c0_58 = arith.constant 0 : index
    %147 = vector.load %arg8[%c0_56, %c0_57, %c0_58] : memref<2x32x64xf32, #tpu.memory_space<vmem>>, vector<1x32x64xf32>
    %148 = vector.shape_cast %147 : vector<1x32x64xf32> to vector<32x64xf32>
    %cst_59 = arith.constant dense<0.000000e+00> : vector<16x64xf32>
    %149 = tpu.matmul %146, %148, %cst_59 {dimension_numbers = #tpu.dot_dimension_numbers<[1], [0], [0], [1], [0, 0, 1, 1], [], []>} : vector<16x32xf32>, vector<32x64xf32>, vector<16x64xf32> -> vector<16x64xf32>
    %c0_60 = arith.constant 0 : index
    %c0_61 = arith.constant 0 : index
    %c0_62 = arith.constant 0 : index
    %150 = vector.load %arg9[%c0_60, %c0_61, %c0_62] : memref<2x1x64xf32, #tpu.memory_space<vmem>>, vector<1x1x64xf32>
    %151 = vector.shape_cast %150 : vector<1x1x64xf32> to vector<1x64xf32>
    %152 = vector.broadcast %151 : vector<1x64xf32> to vector<16x64xf32>
    %153 = arith.addf %149, %152 : vector<16x64xf32>
    %cst_63 = arith.constant 0.000000e+00 : f32
    %154 = vector.broadcast %cst_63 : f32 to vector<16x64xf32>
    %155 = arith.maximumf %153, %154 : vector<16x64xf32>
    %c0_64 = arith.constant 0 : index
    %c0_65 = arith.constant 0 : index
    %c0_66 = arith.constant 0 : index
    %156 = vector.load %arg10[%c0_64, %c0_65, %c0_66] : memref<2x64x32xf32, #tpu.memory_space<vmem>>, vector<1x64x32xf32>
    %157 = vector.shape_cast %156 : vector<1x64x32xf32> to vector<64x32xf32>
    %cst_67 = arith.constant dense<0.000000e+00> : vector<16x32xf32>
    %158 = tpu.matmul %155, %157, %cst_67 {dimension_numbers = #tpu.dot_dimension_numbers<[1], [0], [0], [1], [0, 0, 1, 1], [], []>} : vector<16x64xf32>, vector<64x32xf32>, vector<16x32xf32> -> vector<16x32xf32>
    %159 = arith.addf %122, %158 : vector<16x32xf32>
    %c0_68 = arith.constant 0 : index
    %c0_69 = arith.constant 0 : index
    %c0_70 = arith.constant 0 : index
    %160 = vector.load %arg11[%c0_68, %c0_69, %c0_70] : memref<2x1x32xf32, #tpu.memory_space<vmem>>, vector<1x1x32xf32>
    %161 = vector.shape_cast %160 : vector<1x1x32xf32> to vector<1x32xf32>
    %162 = vector.broadcast %161 : vector<1x32xf32> to vector<16x32xf32>
    %163 = arith.addf %159, %162 : vector<16x32xf32>
    %c1 = arith.constant 1 : index
    %c0_71 = arith.constant 0 : index
    %c0_72 = arith.constant 0 : index
    %164 = vector.load %arg6[%c1, %c0_71, %c0_72] : memref<2x1x32xf32, #tpu.memory_space<vmem>>, vector<1x1x32xf32>
    %165 = vector.shape_cast %164 : vector<1x1x32xf32> to vector<1x32xf32>
    %c1_73 = arith.constant 1 : index
    %c0_74 = arith.constant 0 : index
    %c0_75 = arith.constant 0 : index
    %166 = vector.load %arg7[%c1_73, %c0_74, %c0_75] : memref<2x1x32xf32, #tpu.memory_space<vmem>>, vector<1x1x32xf32>
    %167 = vector.shape_cast %166 : vector<1x1x32xf32> to vector<1x32xf32>
    %cst_76 = arith.constant dense<0.000000e+00> : vector<16xf32>
    %168 = vector.multi_reduction <add>, %163, %cst_76 [1] : vector<16x32xf32> to vector<16xf32>
    %169 = vector.shape_cast %168 : vector<16xf32> to vector<16x1xf32>
    %cst_77 = arith.constant 3.200000e+01 : f32
    %170 = vector.broadcast %cst_77 : f32 to vector<16x1xf32>
    %171 = arith.divf %169, %170 : vector<16x1xf32>
    %172 = vector.broadcast %171 : vector<16x1xf32> to vector<16x32xf32>
    %173 = arith.subf %163, %172 : vector<16x32xf32>
    %174 = arith.mulf %173, %173 : vector<16x32xf32>
    %cst_78 = arith.constant dense<0.000000e+00> : vector<16xf32>
    %175 = vector.multi_reduction <add>, %174, %cst_78 [1] : vector<16x32xf32> to vector<16xf32>
    %176 = vector.shape_cast %175 : vector<16xf32> to vector<16x1xf32>
    %cst_79 = arith.constant 3.100000e+01 : f32
    %177 = vector.broadcast %cst_79 : f32 to vector<16x1xf32>
    %178 = arith.divf %176, %177 : vector<16x1xf32>
    %cst_80 = arith.constant 9.99999997E-7 : f32
    %179 = vector.broadcast %cst_80 : f32 to vector<16x1xf32>
    %180 = arith.addf %178, %179 : vector<16x1xf32>
    %181 = math.rsqrt %180 : vector<16x1xf32>
    %182 = vector.broadcast %181 : vector<16x1xf32> to vector<16x32xf32>
    %183 = arith.mulf %173, %182 : vector<16x32xf32>
    %184 = vector.broadcast %165 : vector<1x32xf32> to vector<16x32xf32>
    %185 = arith.mulf %184, %183 : vector<16x32xf32>
    %186 = vector.broadcast %167 : vector<1x32xf32> to vector<16x32xf32>
    %187 = arith.addf %185, %186 : vector<16x32xf32>
    %c1_81 = arith.constant 1 : index
    %c0_82 = arith.constant 0 : index
    %c0_83 = arith.constant 0 : index
    %188 = vector.load %arg2[%c1_81, %c0_82, %c0_83] : memref<2x32x96xf32, #tpu.memory_space<vmem>>, vector<1x32x96xf32>
    %189 = vector.shape_cast %188 : vector<1x32x96xf32> to vector<32x96xf32>
    %cst_84 = arith.constant dense<0.000000e+00> : vector<16x96xf32>
    %190 = tpu.matmul %187, %189, %cst_84 {dimension_numbers = #tpu.dot_dimension_numbers<[1], [0], [0], [1], [0, 0, 1, 1], [], []>} : vector<16x32xf32>, vector<32x96xf32>, vector<16x96xf32> -> vector<16x96xf32>
    %c1_85 = arith.constant 1 : index
    %c0_86 = arith.constant 0 : index
    %c0_87 = arith.constant 0 : index
    %191 = vector.load %arg3[%c1_85, %c0_86, %c0_87] : memref<2x1x96xf32, #tpu.memory_space<vmem>>, vector<1x1x96xf32>
    %192 = vector.shape_cast %191 : vector<1x1x96xf32> to vector<1x96xf32>
    %193 = vector.broadcast %192 : vector<1x96xf32> to vector<16x96xf32>
    %194 = arith.addf %190, %193 : vector<16x96xf32>
    %195 = vector.extract_strided_slice %194 {offsets = [0, 0], sizes = [16, 32], strides = [1, 1]} : vector<16x96xf32> to vector<16x32xf32>
    %196 = vector.extract_strided_slice %194 {offsets = [0, 32], sizes = [16, 32], strides = [1, 1]} : vector<16x96xf32> to vector<16x32xf32>
    %197 = vector.extract_strided_slice %194 {offsets = [0, 64], sizes = [16, 32], strides = [1, 1]} : vector<16x96xf32> to vector<16x32xf32>
    %198 = vector.extract_strided_slice %195 {offsets = [0, 0], sizes = [16, 8], strides = [1, 1]} : vector<16x32xf32> to vector<16x8xf32>
    %199 = vector.extract_strided_slice %196 {offsets = [0, 0], sizes = [16, 8], strides = [1, 1]} : vector<16x32xf32> to vector<16x8xf32>
    %200 = tpu.transpose %199, [1, 0] : vector<16x8xf32> -> vector<8x16xf32>
    %cst_88 = arith.constant dense<0.000000e+00> : vector<16x16xf32>
    %201 = tpu.matmul %198, %200, %cst_88 {dimension_numbers = #tpu.dot_dimension_numbers<[1], [0], [0], [1], [0, 0, 1, 1], [], []>} : vector<16x8xf32>, vector<8x16xf32>, vector<16x16xf32> -> vector<16x16xf32>
    %202 = vector.broadcast %3 : f32 to vector<16x16xf32>
    %203 = arith.mulf %201, %202 : vector<16x16xf32>
    %204 = arith.addf %203, %1 : vector<16x16xf32>
    %cst_89 = arith.constant dense<0xFF800000> : vector<16xf32>
    %205 = vector.multi_reduction <maximumf>, %204, %cst_89 [1] : vector<16x16xf32> to vector<16xf32>
    %206 = vector.shape_cast %205 : vector<16xf32> to vector<16x1xf32>
    %207 = vector.broadcast %206 : vector<16x1xf32> to vector<16x16xf32>
    %208 = arith.subf %204, %207 : vector<16x16xf32>
    %209 = math.exp %208 : vector<16x16xf32>
    %cst_90 = arith.constant dense<0.000000e+00> : vector<16xf32>
    %210 = vector.multi_reduction <add>, %209, %cst_90 [1] : vector<16x16xf32> to vector<16xf32>
    %211 = vector.shape_cast %210 : vector<16xf32> to vector<16x1xf32>
    %212 = tpu.reciprocal %211 {approx = true} : vector<16x1xf32> -> vector<16x1xf32>
    %213 = vector.broadcast %212 : vector<16x1xf32> to vector<16x16xf32>
    %214 = arith.mulf %209, %213 : vector<16x16xf32>
    %215 = vector.extract_strided_slice %197 {offsets = [0, 0], sizes = [16, 8], strides = [1, 1]} : vector<16x32xf32> to vector<16x8xf32>
    %cst_91 = arith.constant dense<0.000000e+00> : vector<16x8xf32>
    %216 = tpu.matmul %214, %215, %cst_91 {dimension_numbers = #tpu.dot_dimension_numbers<[1], [0], [0], [1], [0, 0, 1, 1], [], []>} : vector<16x16xf32>, vector<16x8xf32>, vector<16x8xf32> -> vector<16x8xf32>
    %217 = vector.extract_strided_slice %195 {offsets = [0, 8], sizes = [16, 8], strides = [1, 1]} : vector<16x32xf32> to vector<16x8xf32>
    %218 = vector.extract_strided_slice %196 {offsets = [0, 8], sizes = [16, 8], strides = [1, 1]} : vector<16x32xf32> to vector<16x8xf32>
    %219 = tpu.transpose %218, [1, 0] : vector<16x8xf32> -> vector<8x16xf32>
    %cst_92 = arith.constant dense<0.000000e+00> : vector<16x16xf32>
    %220 = tpu.matmul %217, %219, %cst_92 {dimension_numbers = #tpu.dot_dimension_numbers<[1], [0], [0], [1], [0, 0, 1, 1], [], []>} : vector<16x8xf32>, vector<8x16xf32>, vector<16x16xf32> -> vector<16x16xf32>
    %221 = vector.broadcast %3 : f32 to vector<16x16xf32>
    %222 = arith.mulf %220, %221 : vector<16x16xf32>
    %223 = arith.addf %222, %1 : vector<16x16xf32>
    %cst_93 = arith.constant dense<0xFF800000> : vector<16xf32>
    %224 = vector.multi_reduction <maximumf>, %223, %cst_93 [1] : vector<16x16xf32> to vector<16xf32>
    %225 = vector.shape_cast %224 : vector<16xf32> to vector<16x1xf32>
    %226 = vector.broadcast %225 : vector<16x1xf32> to vector<16x16xf32>
    %227 = arith.subf %223, %226 : vector<16x16xf32>
    %228 = math.exp %227 : vector<16x16xf32>
    %cst_94 = arith.constant dense<0.000000e+00> : vector<16xf32>
    %229 = vector.multi_reduction <add>, %228, %cst_94 [1] : vector<16x16xf32> to vector<16xf32>
    %230 = vector.shape_cast %229 : vector<16xf32> to vector<16x1xf32>
    %231 = tpu.reciprocal %230 {approx = true} : vector<16x1xf32> -> vector<16x1xf32>
    %232 = vector.broadcast %231 : vector<16x1xf32> to vector<16x16xf32>
    %233 = arith.mulf %228, %232 : vector<16x16xf32>
    %234 = vector.extract_strided_slice %197 {offsets = [0, 8], sizes = [16, 8], strides = [1, 1]} : vector<16x32xf32> to vector<16x8xf32>
    %cst_95 = arith.constant dense<0.000000e+00> : vector<16x8xf32>
    %235 = tpu.matmul %233, %234, %cst_95 {dimension_numbers = #tpu.dot_dimension_numbers<[1], [0], [0], [1], [0, 0, 1, 1], [], []>} : vector<16x16xf32>, vector<16x8xf32>, vector<16x8xf32> -> vector<16x8xf32>
    %236 = vector.extract_strided_slice %195 {offsets = [0, 16], sizes = [16, 8], strides = [1, 1]} : vector<16x32xf32> to vector<16x8xf32>
    %237 = vector.extract_strided_slice %196 {offsets = [0, 16], sizes = [16, 8], strides = [1, 1]} : vector<16x32xf32> to vector<16x8xf32>
    %238 = tpu.transpose %237, [1, 0] : vector<16x8xf32> -> vector<8x16xf32>
    %cst_96 = arith.constant dense<0.000000e+00> : vector<16x16xf32>
    %239 = tpu.matmul %236, %238, %cst_96 {dimension_numbers = #tpu.dot_dimension_numbers<[1], [0], [0], [1], [0, 0, 1, 1], [], []>} : vector<16x8xf32>, vector<8x16xf32>, vector<16x16xf32> -> vector<16x16xf32>
    %240 = vector.broadcast %3 : f32 to vector<16x16xf32>
    %241 = arith.mulf %239, %240 : vector<16x16xf32>
    %242 = arith.addf %241, %1 : vector<16x16xf32>
    %cst_97 = arith.constant dense<0xFF800000> : vector<16xf32>
    %243 = vector.multi_reduction <maximumf>, %242, %cst_97 [1] : vector<16x16xf32> to vector<16xf32>
    %244 = vector.shape_cast %243 : vector<16xf32> to vector<16x1xf32>
    %245 = vector.broadcast %244 : vector<16x1xf32> to vector<16x16xf32>
    %246 = arith.subf %242, %245 : vector<16x16xf32>
    %247 = math.exp %246 : vector<16x16xf32>
    %cst_98 = arith.constant dense<0.000000e+00> : vector<16xf32>
    %248 = vector.multi_reduction <add>, %247, %cst_98 [1] : vector<16x16xf32> to vector<16xf32>
    %249 = vector.shape_cast %248 : vector<16xf32> to vector<16x1xf32>
    %250 = tpu.reciprocal %249 {approx = true} : vector<16x1xf32> -> vector<16x1xf32>
    %251 = vector.broadcast %250 : vector<16x1xf32> to vector<16x16xf32>
    %252 = arith.mulf %247, %251 : vector<16x16xf32>
    %253 = vector.extract_strided_slice %197 {offsets = [0, 16], sizes = [16, 8], strides = [1, 1]} : vector<16x32xf32> to vector<16x8xf32>
    %cst_99 = arith.constant dense<0.000000e+00> : vector<16x8xf32>
    %254 = tpu.matmul %252, %253, %cst_99 {dimension_numbers = #tpu.dot_dimension_numbers<[1], [0], [0], [1], [0, 0, 1, 1], [], []>} : vector<16x16xf32>, vector<16x8xf32>, vector<16x8xf32> -> vector<16x8xf32>
    %255 = vector.extract_strided_slice %195 {offsets = [0, 24], sizes = [16, 8], strides = [1, 1]} : vector<16x32xf32> to vector<16x8xf32>
    %256 = vector.extract_strided_slice %196 {offsets = [0, 24], sizes = [16, 8], strides = [1, 1]} : vector<16x32xf32> to vector<16x8xf32>
    %257 = tpu.transpose %256, [1, 0] : vector<16x8xf32> -> vector<8x16xf32>
    %cst_100 = arith.constant dense<0.000000e+00> : vector<16x16xf32>
    %258 = tpu.matmul %255, %257, %cst_100 {dimension_numbers = #tpu.dot_dimension_numbers<[1], [0], [0], [1], [0, 0, 1, 1], [], []>} : vector<16x8xf32>, vector<8x16xf32>, vector<16x16xf32> -> vector<16x16xf32>
    %259 = vector.broadcast %3 : f32 to vector<16x16xf32>
    %260 = arith.mulf %258, %259 : vector<16x16xf32>
    %261 = arith.addf %260, %1 : vector<16x16xf32>
    %cst_101 = arith.constant dense<0xFF800000> : vector<16xf32>
    %262 = vector.multi_reduction <maximumf>, %261, %cst_101 [1] : vector<16x16xf32> to vector<16xf32>
    %263 = vector.shape_cast %262 : vector<16xf32> to vector<16x1xf32>
    %264 = vector.broadcast %263 : vector<16x1xf32> to vector<16x16xf32>
    %265 = arith.subf %261, %264 : vector<16x16xf32>
    %266 = math.exp %265 : vector<16x16xf32>
    %cst_102 = arith.constant dense<0.000000e+00> : vector<16xf32>
    %267 = vector.multi_reduction <add>, %266, %cst_102 [1] : vector<16x16xf32> to vector<16xf32>
    %268 = vector.shape_cast %267 : vector<16xf32> to vector<16x1xf32>
    %269 = tpu.reciprocal %268 {approx = true} : vector<16x1xf32> -> vector<16x1xf32>
    %270 = vector.broadcast %269 : vector<16x1xf32> to vector<16x16xf32>
    %271 = arith.mulf %266, %270 : vector<16x16xf32>
    %272 = vector.extract_strided_slice %197 {offsets = [0, 24], sizes = [16, 8], strides = [1, 1]} : vector<16x32xf32> to vector<16x8xf32>
    %cst_103 = arith.constant dense<0.000000e+00> : vector<16x8xf32>
    %273 = tpu.matmul %271, %272, %cst_103 {dimension_numbers = #tpu.dot_dimension_numbers<[1], [0], [0], [1], [0, 0, 1, 1], [], []>} : vector<16x16xf32>, vector<16x8xf32>, vector<16x8xf32> -> vector<16x8xf32>
    %274 = tpu.concatenate %216, %235, %254, %273 in 1 : vector<16x8xf32>, vector<16x8xf32>, vector<16x8xf32>, vector<16x8xf32> -> vector<16x32xf32>
    %c1_104 = arith.constant 1 : index
    %c0_105 = arith.constant 0 : index
    %c0_106 = arith.constant 0 : index
    %275 = vector.load %arg4[%c1_104, %c0_105, %c0_106] : memref<2x32x32xf32, #tpu.memory_space<vmem>>, vector<1x32x32xf32>
    %276 = vector.shape_cast %275 : vector<1x32x32xf32> to vector<32x32xf32>
    %cst_107 = arith.constant dense<0.000000e+00> : vector<16x32xf32>
    %277 = tpu.matmul %274, %276, %cst_107 {dimension_numbers = #tpu.dot_dimension_numbers<[1], [0], [0], [1], [0, 0, 1, 1], [], []>} : vector<16x32xf32>, vector<32x32xf32>, vector<16x32xf32> -> vector<16x32xf32>
    %c1_108 = arith.constant 1 : index
    %c0_109 = arith.constant 0 : index
    %c0_110 = arith.constant 0 : index
    %278 = vector.load %arg5[%c1_108, %c0_109, %c0_110] : memref<2x1x32xf32, #tpu.memory_space<vmem>>, vector<1x1x32xf32>
    %279 = vector.shape_cast %278 : vector<1x1x32xf32> to vector<1x32xf32>
    %280 = vector.broadcast %279 : vector<1x32xf32> to vector<16x32xf32>
    %281 = arith.addf %277, %280 : vector<16x32xf32>
    %282 = arith.addf %163, %281 : vector<16x32xf32>
    %c1_111 = arith.constant 1 : index
    %c0_112 = arith.constant 0 : index
    %c0_113 = arith.constant 0 : index
    %283 = vector.load %arg12[%c1_111, %c0_112, %c0_113] : memref<2x1x32xf32, #tpu.memory_space<vmem>>, vector<1x1x32xf32>
    %284 = vector.shape_cast %283 : vector<1x1x32xf32> to vector<1x32xf32>
    %c1_114 = arith.constant 1 : index
    %c0_115 = arith.constant 0 : index
    %c0_116 = arith.constant 0 : index
    %285 = vector.load %arg13[%c1_114, %c0_115, %c0_116] : memref<2x1x32xf32, #tpu.memory_space<vmem>>, vector<1x1x32xf32>
    %286 = vector.shape_cast %285 : vector<1x1x32xf32> to vector<1x32xf32>
    %cst_117 = arith.constant dense<0.000000e+00> : vector<16xf32>
    %287 = vector.multi_reduction <add>, %282, %cst_117 [1] : vector<16x32xf32> to vector<16xf32>
    %288 = vector.shape_cast %287 : vector<16xf32> to vector<16x1xf32>
    %cst_118 = arith.constant 3.200000e+01 : f32
    %289 = vector.broadcast %cst_118 : f32 to vector<16x1xf32>
    %290 = arith.divf %288, %289 : vector<16x1xf32>
    %291 = vector.broadcast %290 : vector<16x1xf32> to vector<16x32xf32>
    %292 = arith.subf %282, %291 : vector<16x32xf32>
    %293 = arith.mulf %292, %292 : vector<16x32xf32>
    %cst_119 = arith.constant dense<0.000000e+00> : vector<16xf32>
    %294 = vector.multi_reduction <add>, %293, %cst_119 [1] : vector<16x32xf32> to vector<16xf32>
    %295 = vector.shape_cast %294 : vector<16xf32> to vector<16x1xf32>
    %cst_120 = arith.constant 3.100000e+01 : f32
    %296 = vector.broadcast %cst_120 : f32 to vector<16x1xf32>
    %297 = arith.divf %295, %296 : vector<16x1xf32>
    %cst_121 = arith.constant 9.99999997E-7 : f32
    %298 = vector.broadcast %cst_121 : f32 to vector<16x1xf32>
    %299 = arith.addf %297, %298 : vector<16x1xf32>
    %300 = math.rsqrt %299 : vector<16x1xf32>
    %301 = vector.broadcast %300 : vector<16x1xf32> to vector<16x32xf32>
    %302 = arith.mulf %292, %301 : vector<16x32xf32>
    %303 = vector.broadcast %284 : vector<1x32xf32> to vector<16x32xf32>
    %304 = arith.mulf %303, %302 : vector<16x32xf32>
    %305 = vector.broadcast %286 : vector<1x32xf32> to vector<16x32xf32>
    %306 = arith.addf %304, %305 : vector<16x32xf32>
    %c1_122 = arith.constant 1 : index
    %c0_123 = arith.constant 0 : index
    %c0_124 = arith.constant 0 : index
    %307 = vector.load %arg8[%c1_122, %c0_123, %c0_124] : memref<2x32x64xf32, #tpu.memory_space<vmem>>, vector<1x32x64xf32>
    %308 = vector.shape_cast %307 : vector<1x32x64xf32> to vector<32x64xf32>
    %cst_125 = arith.constant dense<0.000000e+00> : vector<16x64xf32>
    %309 = tpu.matmul %306, %308, %cst_125 {dimension_numbers = #tpu.dot_dimension_numbers<[1], [0], [0], [1], [0, 0, 1, 1], [], []>} : vector<16x32xf32>, vector<32x64xf32>, vector<16x64xf32> -> vector<16x64xf32>
    %c1_126 = arith.constant 1 : index
    %c0_127 = arith.constant 0 : index
    %c0_128 = arith.constant 0 : index
    %310 = vector.load %arg9[%c1_126, %c0_127, %c0_128] : memref<2x1x64xf32, #tpu.memory_space<vmem>>, vector<1x1x64xf32>
    %311 = vector.shape_cast %310 : vector<1x1x64xf32> to vector<1x64xf32>
    %312 = vector.broadcast %311 : vector<1x64xf32> to vector<16x64xf32>
    %313 = arith.addf %309, %312 : vector<16x64xf32>
    %cst_129 = arith.constant 0.000000e+00 : f32
    %314 = vector.broadcast %cst_129 : f32 to vector<16x64xf32>
    %315 = arith.maximumf %313, %314 : vector<16x64xf32>
    %c1_130 = arith.constant 1 : index
    %c0_131 = arith.constant 0 : index
    %c0_132 = arith.constant 0 : index
    %316 = vector.load %arg10[%c1_130, %c0_131, %c0_132] : memref<2x64x32xf32, #tpu.memory_space<vmem>>, vector<1x64x32xf32>
    %317 = vector.shape_cast %316 : vector<1x64x32xf32> to vector<64x32xf32>
    %cst_133 = arith.constant dense<0.000000e+00> : vector<16x32xf32>
    %318 = tpu.matmul %315, %317, %cst_133 {dimension_numbers = #tpu.dot_dimension_numbers<[1], [0], [0], [1], [0, 0, 1, 1], [], []>} : vector<16x64xf32>, vector<64x32xf32>, vector<16x32xf32> -> vector<16x32xf32>
    %319 = arith.addf %282, %318 : vector<16x32xf32>
    %c1_134 = arith.constant 1 : index
    %c0_135 = arith.constant 0 : index
    %c0_136 = arith.constant 0 : index
    %320 = vector.load %arg11[%c1_134, %c0_135, %c0_136] : memref<2x1x32xf32, #tpu.memory_space<vmem>>, vector<1x1x32xf32>
    %321 = vector.shape_cast %320 : vector<1x1x32xf32> to vector<1x32xf32>
    %322 = vector.broadcast %321 : vector<1x32xf32> to vector<16x32xf32>
    %323 = arith.addf %319, %322 : vector<16x32xf32>
    %c0_137 = arith.constant 0 : index
    %c0_138 = arith.constant 0 : index
    %324 = vector.load %arg14[%c0_137, %c0_138] : memref<1x32xf32, #tpu.memory_space<vmem>>, vector<1x32xf32>
    %c0_139 = arith.constant 0 : index
    %c0_140 = arith.constant 0 : index
    %325 = vector.load %arg15[%c0_139, %c0_140] : memref<1x32xf32, #tpu.memory_space<vmem>>, vector<1x32xf32>
    %cst_141 = arith.constant dense<0.000000e+00> : vector<16xf32>
    %326 = vector.multi_reduction <add>, %323, %cst_141 [1] : vector<16x32xf32> to vector<16xf32>
    %327 = vector.shape_cast %326 : vector<16xf32> to vector<16x1xf32>
    %cst_142 = arith.constant 3.200000e+01 : f32
    %328 = vector.broadcast %cst_142 : f32 to vector<16x1xf32>
    %329 = arith.divf %327, %328 : vector<16x1xf32>
    %330 = vector.broadcast %329 : vector<16x1xf32> to vector<16x32xf32>
    %331 = arith.subf %323, %330 : vector<16x32xf32>
    %332 = arith.mulf %331, %331 : vector<16x32xf32>
    %cst_143 = arith.constant dense<0.000000e+00> : vector<16xf32>
    %333 = vector.multi_reduction <add>, %332, %cst_143 [1] : vector<16x32xf32> to vector<16xf32>
    %334 = vector.shape_cast %333 : vector<16xf32> to vector<16x1xf32>
    %cst_144 = arith.constant 3.100000e+01 : f32
    %335 = vector.broadcast %cst_144 : f32 to vector<16x1xf32>
    %336 = arith.divf %334, %335 : vector<16x1xf32>
    %cst_145 = arith.constant 9.99999997E-7 : f32
    %337 = vector.broadcast %cst_145 : f32 to vector<16x1xf32>
    %338 = arith.addf %336, %337 : vector<16x1xf32>
    %339 = math.rsqrt %338 : vector<16x1xf32>
    %340 = vector.broadcast %339 : vector<16x1xf32> to vector<16x32xf32>
    %341 = arith.mulf %331, %340 : vector<16x32xf32>
    %342 = vector.broadcast %324 : vector<1x32xf32> to vector<16x32xf32>
    %343 = arith.mulf %342, %341 : vector<16x32xf32>
    %344 = vector.broadcast %325 : vector<1x32xf32> to vector<16x32xf32>
    %345 = arith.addf %343, %344 : vector<16x32xf32>
    %c0_146 = arith.constant 0 : index
    %c0_147 = arith.constant 0 : index
    %346 = vector.load %arg16[%c0_146, %c0_147] : memref<16x32xf32, #tpu.memory_space<vmem>>, vector<16x32xf32>
    tpu.vector_store %arg16[%c0_146, %c0_147], %345 {strides = array<i32>} : memref<16x32xf32, #tpu.memory_space<vmem>>, vector<16x32xf32>,
    return
  }
}

</mosaic_0001>

<llo_original>
// kernel: tpu_custom_call.1
$region0: #{tpu_custom_call.1}
  #allocation0 [shape = 'u32[]', space=smem, size = 0x4, offset = 0x4, fixed_abs, tag = 'smem constant byte address 0x4 - core index']
  #allocation1 [shape = 'u32[72,128]{1,0:T(1,128)}', space=vmem, size = 0x9000, scoped, tag = 'internal scratch']
  %s0 = inlined_call_operand.hbm [shape: f32[16,32], index: 0, kind: input, shape index: {}]
  %s1 = inlined_call_operand.hbm [shape: f32[16,16], index: 1, kind: input, shape index: {}]
  %s2 = inlined_call_operand.vmem [shape: f32[2,32,96], index: 2, kind: input, shape index: {}]
  %s3 = inlined_call_operand.vmem [shape: f32[2,1,96], index: 3, kind: input, shape index: {}]
  %s4 = inlined_call_operand.vmem [shape: f32[2,32,32], index: 4, kind: input, shape index: {}]
  %s5 = inlined_call_operand.hbm [shape: f32[2,1,32], index: 5, kind: input, shape index: {}]
  %s6 = inlined_call_operand.vmem [shape: f32[2,1,32], index: 6, kind: input, shape index: {}]
  %s7 = inlined_call_operand.hbm [shape: f32[2,1,32], index: 7, kind: input, shape index: {}]
  %s8 = inlined_call_operand.vmem [shape: f32[2,32,64], index: 8, kind: input, shape index: {}]
  %s9 = inlined_call_operand.vmem [shape: f32[2,1,64], index: 9, kind: input, shape index: {}]
  %s10 = inlined_call_operand.vmem [shape: f32[2,64,32], index: 10, kind: input, shape index: {}]
  %s11 = inlined_call_operand.vmem [shape: f32[2,1,32], index: 11, kind: input, shape index: {}]
  %s12 = inlined_call_operand.vmem [shape: f32[2,1,32], index: 12, kind: input, shape index: {}]
  %s13 = inlined_call_operand.hbm [shape: f32[2,1,32], index: 13, kind: input, shape index: {}]
  %s14 = inlined_call_operand.vmem [shape: f32[1,32], index: 14, kind: input, shape index: {}]
  %s15 = inlined_call_operand.vmem [shape: f32[1,32], index: 15, kind: input, shape index: {}]
  %s16 = inlined_call_operand.hbm [shape: f32[16,32], index: 16, kind: output, shape index: {}]
  %s17 = sld [smem:[#allocation0]]
  $region94: #{tpu_custom_call.1} parent=0
    _
  %s19 = ssub.s32 1, %s17
  %s20 = scalar_select 0, %s19, %s17
  $region1: #{tpu_custom_call.1} parent=0
    #allocation2 [shape = 'u8[8192]{0}', space=vmem, size = 0x2000, scoped, tag = 'input window, operand 0, single buffered']
    #allocation3 [shape = 's32[1]{0}', space=sflag, size = 0x4, scoped, tag = 'scoped memory for tpu_custom_call.1']
    #allocation4 [shape = 's32[1]{0}', space=sflag, size = 0x4, scoped, tag = 'scoped memory for tpu_custom_call.1']
    #allocation5 [shape = 'u8[8192]{0}', space=vmem, size = 0x2000, scoped, tag = 'input window, operand 1, single buffered']
    #allocation6 [shape = 's32[1]{0}', space=sflag, size = 0x4, scoped, tag = 'scoped memory for tpu_custom_call.1']
    #allocation7 [shape = 'u8[1024]{0}', space=vmem, size = 0x400, scoped, tag = 'input window, operand 5, single buffered']
    #allocation8 [shape = 'u8[1024]{0}', space=vmem, size = 0x400, scoped, tag = 'input window, operand 7, single buffered']
    #allocation9 [shape = 's32[1]{0}', space=sflag, size = 0x4, scoped, tag = 'scoped memory for tpu_custom_call.1']
    #allocation10 [shape = 'u8[1024]{0}', space=vmem, size = 0x400, scoped, tag = 'input window, operand 13, single buffered']
    #allocation11 [shape = 'u8[8192]{0}', space=vmem, size = 0x2000, scoped, tag = 'output window, operand 0, single buffered']
    %21 = vsyncpa [#allocation3], 0
    %22 = vsyncpa [#allocation6], 0
    %23 = vsyncpa [#allocation9], 0
    %24 = vsyncpa [#allocation4], 0
    // Predicated region
    $region2: #{tpu_custom_call.1} parent=1 // pred_check
      _
    $region3: #{tpu_custom_call.1} parent=1 // pred_check_branch
      %26 = sbr.rel (0) target = $region5
    $region4: #{tpu_custom_call.1} parent=1 // pred_region
      %28 = vsyncadd [#allocation3], 0
      %s29 = sshll.u32 %s0, 4
      %s30 = int_to_ptr.hbm [resolvable:$true] %s29
      %s31 = sshll.u32 [#allocation2], 4
      %s32 = int_to_ptr.vmem [resolvable:$true] %s31
      %37 = dma.hbm_to_vmem [thread:$0]  %s30, 256, %s32, [#allocation3], 128, 128, 8
    $region5: #{tpu_custom_call.1} parent=1 // pred_fallthru
      _
    // Predicated region
    $region6: #{tpu_custom_call.1} parent=1 // pred_check
      _
    $region7: #{tpu_custom_call.1} parent=1 // pred_check_branch
      %39 = sbr.rel (0) target = $region9
    $region8: #{tpu_custom_call.1} parent=1 // pred_region
      %41 = vsyncadd [#allocation6], 0
      %s42 = sshll.u32 %s1, 4
      %s43 = int_to_ptr.hbm [resolvable:$true] %s42
      %s44 = sshll.u32 [#allocation5], 4
      %s45 = int_to_ptr.vmem [resolvable:$true] %s44
      %50 = dma.hbm_to_vmem [thread:$0]  %s43, 256, %s45, [#allocation6], 128, 128, 8
    $region9: #{tpu_custom_call.1} parent=1 // pred_fallthru
      _
    // Predicated region
    $region10: #{tpu_custom_call.1} parent=1 // pred_check
      _
    $region11: #{tpu_custom_call.1} parent=1 // pred_check_branch
      %52 = sbr.rel (0) target = $region13
    $region12: #{tpu_custom_call.1} parent=1 // pred_region
      _
    $region13: #{tpu_custom_call.1} parent=1 // pred_fallthru
      _
    // Predicated region
    $region14: #{tpu_custom_call.1} parent=1 // pred_check
      _
    $region15: #{tpu_custom_call.1} parent=1 // pred_check_branch
      %54 = sbr.rel (0) target = $region17
    $region16: #{tpu_custom_call.1} parent=1 // pred_region
      _
    $region17: #{tpu_custom_call.1} parent=1 // pred_fallthru
      _
    // Predicated region
    $region18: #{tpu_custom_call.1} parent=1 // pred_check
      _
    $region19: #{tpu_custom_call.1} parent=1 // pred_check_branch
      %56 = sbr.rel (0) target = $region21
    $region20: #{tpu_custom_call.1} parent=1 // pred_region
      _
    $region21: #{tpu_custom_call.1} parent=1 // pred_fallthru
      _
    // Predicated region
    $region22: #{tpu_custom_call.1} parent=1 // pred_check
      _
    $region23: #{tpu_custom_call.1} parent=1 // pred_check_branch
      %58 = sbr.rel (0) target = $region25
    $region24: #{tpu_custom_call.1} parent=1 // pred_region
      %60 = vsyncadd [#allocation6], 0
      %s61 = sshll.u32 %s5, 4
      %s62 = int_to_ptr.hbm [resolvable:$true] %s61
      %s63 = sshll.u32 [#allocation7], 4
      %s64 = int_to_ptr.vmem [resolvable:$true] %s63
      %69 = dma.hbm_to_vmem [thread:$0]  %s62, 32, %s64, [#allocation6], 16, 16, 1
    $region25: #{tpu_custom_call.1} parent=1 // pred_fallthru
      _
    // Predicated region
    $region26: #{tpu_custom_call.1} parent=1 // pred_check
      _
    $region27: #{tpu_custom_call.1} parent=1 // pred_check_branch
      %71 = sbr.rel (0) target = $region29
    $region28: #{tpu_custom_call.1} parent=1 // pred_region
      _
    $region29: #{tpu_custom_call.1} parent=1 // pred_fallthru
      _
    // Predicated region
    $region30: #{tpu_custom_call.1} parent=1 // pred_check
      _
    $region31: #{tpu_custom_call.1} parent=1 // pred_check_branch
      %73 = sbr.rel (0) target = $region33
    $region32: #{tpu_custom_call.1} parent=1 // pred_region
      %75 = vsyncadd [#allocation9], 0
      %s76 = sshll.u32 %s7, 4
      %s77 = int_to_ptr.hbm [resolvable:$true] %s76
      %s78 = sshll.u32 [#allocation8], 4
      %s79 = int_to_ptr.vmem [resolvable:$true] %s78
      %84 = dma.hbm_to_vmem [thread:$0]  %s77, 32, %s79, [#allocation9], 16, 16, 1
    $region33: #{tpu_custom_call.1} parent=1 // pred_fallthru
      _
    // Predicated region
    $region34: #{tpu_custom_call.1} parent=1 // pred_check
      _
    $region35: #{tpu_custom_call.1} parent=1 // pred_check_branch
      %86 = sbr.rel (0) target = $region37
    $region36: #{tpu_custom_call.1} parent=1 // pred_region
      _
    $region37: #{tpu_custom_call.1} parent=1 // pred_fallthru
      _
    // Predicated region
    $region38: #{tpu_custom_call.1} parent=1 // pred_check
      _
    $region39: #{tpu_custom_call.1} parent=1 // pred_check_branch
      %88 = sbr.rel (0) target = $region41
    $region40: #{tpu_custom_call.1} parent=1 // pred_region
      _
    $region41: #{tpu_custom_call.1} parent=1 // pred_fallthru
      _
    // Predicated region
    $region42: #{tpu_custom_call.1} parent=1 // pred_check
      _
    $region43: #{tpu_custom_call.1} parent=1 // pred_check_branch
      %90 = sbr.rel (0) target = $region45
    $region44: #{tpu_custom_call.1} parent=1 // pred_region
      _
    $region45: #{tpu_custom_call.1} parent=1 // pred_fallthru
      _
    // Predicated region
    $region46: #{tpu_custom_call.1} parent=1 // pred_check
      _
    $region47: #{tpu_custom_call.1} parent=1 // pred_check_branch
      %92 = sbr.rel (0) target = $region49
    $region48: #{tpu_custom_call.1} parent=1 // pred_region
      _
    $region49: #{tpu_custom_call.1} parent=1 // pred_fallthru
      _
    // Predicated region
    $region50: #{tpu_custom_call.1} parent=1 // pred_check
      _
    $region51: #{tpu_custom_call.1} parent=1 // pred_check_branch
      %94 = sbr.rel (0) target = $region53
    $region52: #{tpu_custom_call.1} parent=1 // pred_region
      _
    $region53: #{tpu_custom_call.1} parent=1 // pred_fallthru
      _
    // Predicated region
    $region54: #{tpu_custom_call.1} parent=1 // pred_check
      _
    $region55: #{tpu_custom_call.1} parent=1 // pred_check_branch
      %96 = sbr.rel (0) target = $region57
    $region56: #{tpu_custom_call.1} parent=1 // pred_region
      %98 = vsyncadd [#allocation9], 0
      %s99 = sshll.u32 %s13, 4
      %s100 = int_to_ptr.hbm [resolvable:$true] %s99
      %s101 = sshll.u32 [#allocation10], 4
      %s102 = int_to_ptr.vmem [resolvable:$true] %s101
      %107 = dma.hbm_to_vmem [thread:$0]  %s100, 32, %s102, [#allocation9], 16, 16, 1
    $region57: #{tpu_custom_call.1} parent=1 // pred_fallthru
      _
    // Predicated region
    $region58: #{tpu_custom_call.1} parent=1 // pred_check
      _
    $region59: #{tpu_custom_call.1} parent=1 // pred_check_branch
      %109 = sbr.rel (0) target = $region61
    $region60: #{tpu_custom_call.1} parent=1 // pred_region
      _
    $region61: #{tpu_custom_call.1} parent=1 // pred_fallthru
      _
    // Predicated region
    $region62: #{tpu_custom_call.1} parent=1 // pred_check
      _
    $region63: #{tpu_custom_call.1} parent=1 // pred_check_branch
      %111 = sbr.rel (0) target = $region65
    $region64: #{tpu_custom_call.1} parent=1 // pred_region
      _
    $region65: #{tpu_custom_call.1} parent=1 // pred_fallthru
      _
    // Predicated region
    $region66: #{tpu_custom_call.1} parent=1 // pred_check
      _
    $region67: #{tpu_custom_call.1} parent=1 // pred_check_branch
      %113 = sbr.rel (0) target = $region69
    $region68: #{tpu_custom_call.1} parent=1 // pred_region
      %115 = dma.done [#allocation3], 256
    $region69: #{tpu_custom_call.1} parent=1 // pred_fallthru
      _
    // Predicated region
    $region70: #{tpu_custom_call.1} parent=1 // pred_check
      _
    $region71: #{tpu_custom_call.1} parent=1 // pred_check_branch
      %117 = sbr.rel (0) target = $region73
    $region72: #{tpu_custom_call.1} parent=1 // pred_region
      %119 = dma.done [#allocation6], 256
    $region73: #{tpu_custom_call.1} parent=1 // pred_fallthru
      _
    // Predicated region
    $region74: #{tpu_custom_call.1} parent=1 // pred_check
      _
    $region75: #{tpu_custom_call.1} parent=1 // pred_check_branch
      %121 = sbr.rel (0) target = $region77
    $region76: #{tpu_custom_call.1} parent=1 // pred_region
      %123 = dma.done [#allocation6], 32
    $region77: #{tpu_custom_call.1} parent=1 // pred_fallthru
      _
    // Predicated region
    $region78: #{tpu_custom_call.1} parent=1 // pred_check
      _
    $region79: #{tpu_custom_call.1} parent=1 // pred_check_branch
      %125 = sbr.rel (0) target = $region81
    $region80: #{tpu_custom_call.1} parent=1 // pred_region
      %127 = dma.done [#allocation9], 32
    $region81: #{tpu_custom_call.1} parent=1 // pred_fallthru
      _
    // Predicated region
    $region82: #{tpu_custom_call.1} parent=1 // pred_check
      _
    $region83: #{tpu_custom_call.1} parent=1 // pred_check_branch
      %129 = sbr.rel (0) target = $region85
    $region84: #{tpu_custom_call.1} parent=1 // pred_region
      %131 = dma.done [#allocation9], 32
    $region85: #{tpu_custom_call.1} parent=1 // pred_fallthru
      _
    %v132 = vld [vmem:[#allocation2] sm:$0xff]
    %v133 = vld [vmem:[#allocation2 + $0x8] sm:$0xff]
    %v134 = vld [vmem:[#allocation5] sm:$0xff]
    %v135 = vld [vmem:[#allocation5 + $0x8] sm:$0xff]
    %v136 = vld [vmem:[%s6] sm:$0x1]
    %v137 = vld [vmem:[#allocation8] sm:$0x1]
    %vm138 = vcmask 261120
    %v139 = vsel %vm138, %v132, 0.0
    %140 = vadd.xlane.f32.xlu0 %v139
    %v141 = vpop.xlane.xlu0 %140
    %v142 = vsel %vm138, %v133, 0.0
    %143 = vadd.xlane.f32.xlu0 %v142
    %v144 = vpop.xlane.xlu0 %143
    %v145 = vrcp.pop 32.0
    %v146 = vmul.f32 32.0, %v145
    %v147 = vsub.f32 1.0, %v146
    %v148 = vmul.f32 %v145, %v147
    %v149 = vadd.f32 %v145, %v148
    %vm150 = vweird.f32 %v145
    %v151 = vsel %vm150, %v145, %v149
    %v152 = vmul.f32 %v141, %v151
    %v153 = vmul.f32 %v144, %v151
    %v154 = vsub.f32 %v132, %v152
    %v155 = vsub.f32 %v133, %v153
    %v156 = vmul.f32 %v154, %v154
    %v157 = vmul.f32 %v155, %v155
    %v158 = vsel %vm138, %v156, 0.0
    %159 = vadd.xlane.f32.xlu0 %v158
    %v160 = vpop.xlane.xlu0 %159
    %v161 = vsel %vm138, %v157, 0.0
    %162 = vadd.xlane.f32.xlu0 %v161
    %v163 = vpop.xlane.xlu0 %162
    %v164 = vrcp.pop 31.0
    %v165 = vmul.f32 31.0, %v164
    %v166 = vsub.f32 1.0, %v165
    %v167 = vmul.f32 %v164, %v166
    %v168 = vadd.f32 %v164, %v167
    %vm169 = vweird.f32 %v164
    %v170 = vsel %vm169, %v164, %v168
    %v171 = vmul.f32 %v160, %v170
    %v172 = vmul.f32 %v163, %v170
    %v173 = vadd.f32 %v171, 1e-06
    %v174 = vadd.f32 %v172, 1e-06
    %v175 = vrsqrt.pop %v173
    %v176 = vmul.f32 %v175, %v173
    %v177 = vmul.f32 %v176, %v175
    %v178 = vmul.f32 0.5, %v177
    %v179 = vsub.f32 1.5, %v178
    %v180 = vmul.f32 %v175, %v179
    %vm181 = vweird.f32 %v173
    %vm182 = vweird.f32 %v175
    %vm183 = vmor %vm181, %vm182
    %v184 = vsel %vm183, %v175, %v180
    %v185 = vrsqrt.pop %v174
    %v186 = vmul.f32 %v185, %v174
    %v187 = vmul.f32 %v186, %v185
    %v188 = vmul.f32 0.5, %v187
    %v189 = vsub.f32 1.5, %v188
    %v190 = vmul.f32 %v185, %v189
    %vm191 = vweird.f32 %v174
    %vm192 = vweird.f32 %v185
    %vm193 = vmor %vm191, %vm192
    %v194 = vsel %vm193, %v185, %v190
    %v195 = vmul.f32 %v154, %v184
    %v196 = vmul.f32 %v155, %v194
    %v198 = vperm.slane %v136, 0
    %v200 = vmul.f32 %v198, %v195
    %v201 = vmul.f32 %v198, %v196
    %v203 = vperm.slane %v137, 0
    %v205 = vadd.f32 %v200, %v203
    %v206 = vadd.f32 %v201, %v203
    %v207 = vld [vmem:[%s2] sm:$0xff]
    %v208 = vld [vmem:[%s2 + $0x8] sm:$0xff]
    %v209 = vld [vmem:[%s2 + $0x10] sm:$0xff]
    %v210 = vld [vmem:[%s2 + $0x18] sm:$0xff]
    %v211 = vld [vmem:[%s3] sm:$0x1]
    %v213 = vperm.slane %v211, 0
    %v216 = vsel %vm138, %v205, 0
    %v219 = vsel %vm138, %v206, 0
    %221 = vmatpush.msra.mxu0 0.0
    %222 = vmatpush.msra.mxu0 0.0
    %223 = vmatpush.msra.mxu0 0.0
    %224 = vmatpush.msra.mxu0 0.0
    %225 = vmatpush.msra.mxu0 0.0
    %226 = vmatpush.msra.mxu0 0.0
    %227 = vmatpush.msra.mxu0 0.0
    %228 = vmatpush.msra.mxu0 0.0
    %229 = vmatpush.msra.mxu0 0.0
    %230 = vmatpush.msra.mxu0 0.0
    %231 = vmatpush.msra.mxu0 0.0
    %232 = vmatpush.msra.mxu0 0.0
    %233 = vmatpush.msra.mxu0 %v210
    %234 = vmatpush.msra.mxu0 %v209
    %235 = vmatpush.msra.mxu0 %v208
    %236 = vmatpush.msra.mxu0 %v207
    %237 = vmatmul.f32.gmra.mxu0 %v216
    %v238 = vpop.f32.mrf.mxu0
    %v239 = vadd.f32 %v213, %v238
    %240 = vmatmul.f32.gmra.mxu0 %v219
    %v241 = vpop.f32.mrf.mxu0
    %v242 = vadd.f32 %v213, %v241
    %243 = vdwg.mxu0
    %246 = vrot.lane.b32.xlu0 %v239, 96
    %v247 = vpop.permute.xlu0 %246
    %248 = vrot.lane.b32.xlu0 %v242, 96
    %v249 = vpop.permute.xlu0 %248
    %vm250 = vcmask 64512
    %v251 = vsel %vm250, %v239, 0
    %v253 = vsel %vm250, %v242, 0
    %v255 = vsel %vm250, %v247, 0
    %v257 = vsel %vm250, %v249, 0
    %259 = vmatpush.xpose.msra.mxu0 0.0
    %260 = vmatpush.xpose.msra.mxu0 0.0
    %261 = vmatpush.xpose.msra.mxu0 0.0
    %262 = vmatpush.xpose.msra.mxu0 0.0
    %263 = vmatpush.xpose.msra.mxu0 0.0
    %264 = vmatpush.xpose.msra.mxu0 0.0
    %265 = vmatpush.xpose.msra.mxu0 0.0
    %266 = vmatpush.xpose.msra.mxu0 0.0
    %267 = vmatpush.xpose.msra.mxu0 0.0
    %268 = vmatpush.xpose.msra.mxu0 0.0
    %269 = vmatpush.xpose.msra.mxu0 0.0
    %270 = vmatpush.xpose.msra.mxu0 0.0
    %271 = vmatpush.xpose.msra.mxu0 0.0
    %272 = vmatpush.xpose.msra.mxu0 0.0
    %273 = vmatpush.xpose.msra.mxu0 %v257
    %274 = vmatpush.xpose.msra.mxu0 %v255
    %275 = vmatmul.f32.gmra.mxu0 %v251
    %v276 = vpop.f32.mrf.mxu0
    %v277 = vadd.f32 0.0, %v276
    %278 = vmatmul.f32.gmra.mxu0 %v253
    %v279 = vpop.f32.mrf.mxu0
    %v280 = vadd.f32 0.0, %v279
    %281 = vdwg.mxu0
    %v282 = vmul.f32 %v277, 0.35355338
    %v283 = vmul.f32 %v280, 0.35355338
    %v284 = vadd.f32 %v282, %v134
    %v285 = vadd.f32 %v283, %v135
    %vm286 = vcmask 130048
    %v287 = vsel %vm286, %v284, -inf
    %288 = vmax.xlane.f32.xlu0 %v287
    %v289 = vpop.xlane.xlu0 %288
    %v290 = vsel %vm286, %v285, -inf
    %291 = vmax.xlane.f32.xlu0 %v290
    %v292 = vpop.xlane.xlu0 %291
    %v293 = vsub.f32 %v284, %v289
    %v294 = vsub.f32 %v285, %v292
    %v295 = vmul.f32 %v293, 1.442695
    %v296 = vpow.pop %v295
    %v297 = vmul.f32 %v294, 1.442695
    %v298 = vpow.pop %v297
    %v299 = vsel %vm286, %v296, 0.0
    %300 = vadd.xlane.f32.xlu0 %v299
    %v301 = vpop.xlane.xlu0 %300
    %v302 = vsel %vm286, %v298, 0.0
    %303 = vadd.xlane.f32.xlu0 %v302
    %v304 = vpop.xlane.xlu0 %303
    %v305 = vrcp.pop %v301
    %v306 = vrcp.pop %v304
    %v307 = vmul.f32 %v296, %v305
    %v308 = vmul.f32 %v298, %v306
    %309 = vrot.lane.b32.xlu0 %v239, 64
    %v310 = vpop.permute.xlu0 %309
    %311 = vrot.lane.b32.xlu0 %v242, 64
    %v312 = vpop.permute.xlu0 %311
    %v316 = vsel %vm286, %v307, 0
    %v319 = vsel %vm286, %v308, 0
    %321 = vmatpush.msra.mxu0 0.0
    %322 = vmatpush.msra.mxu0 0.0
    %323 = vmatpush.msra.mxu0 0.0
    %324 = vmatpush.msra.mxu0 0.0
    %325 = vmatpush.msra.mxu0 0.0
    %326 = vmatpush.msra.mxu0 0.0
    %327 = vmatpush.msra.mxu0 0.0
    %328 = vmatpush.msra.mxu0 0.0
    %329 = vmatpush.msra.mxu0 0.0
    %330 = vmatpush.msra.mxu0 0.0
    %331 = vmatpush.msra.mxu0 0.0
    %332 = vmatpush.msra.mxu0 0.0
    %333 = vmatpush.msra.mxu0 0.0
    %334 = vmatpush.msra.mxu0 0.0
    %335 = vmatpush.msra.mxu0 %v312
    %336 = vmatpush.msra.mxu0 %v310
    %337 = vmatmul.f32.gmra.mxu0 %v316
    %v338 = vpop.f32.mrf.mxu0
    %v339 = vadd.f32 0.0, %v338
    %340 = vmatmul.f32.gmra.mxu0 %v319
    %v341 = vpop.f32.mrf.mxu0
    %v342 = vadd.f32 0.0, %v341
    %343 = vdwg.mxu0
    %344 = vrot.lane.b32.xlu0 %v239, 120
    %v345 = vpop.permute.xlu0 %344
    %346 = vrot.lane.b32.xlu0 %v242, 120
    %v347 = vpop.permute.xlu0 %346
    %348 = vrot.lane.b32.xlu0 %v239, 88
    %v349 = vpop.permute.xlu0 %348
    %350 = vrot.lane.b32.xlu0 %v242, 88
    %v351 = vpop.permute.xlu0 %350
    %v352 = vsel %vm250, %v345, 0
    %v354 = vsel %vm250, %v347, 0
    %v356 = vsel %vm250, %v349, 0
    %v358 = vsel %vm250, %v351, 0
    %360 = vmatpush.xpose.msra.mxu0 0.0
    %361 = vmatpush.xpose.msra.mxu0 0.0
    %362 = vmatpush.xpose.msra.mxu0 0.0
    %363 = vmatpush.xpose.msra.mxu0 0.0
    %364 = vmatpush.xpose.msra.mxu0 0.0
    %365 = vmatpush.xpose.msra.mxu0 0.0
    %366 = vmatpush.xpose.msra.mxu0 0.0
    %367 = vmatpush.xpose.msra.mxu0 0.0
    %368 = vmatpush.xpose.msra.mxu0 0.0
    %369 = vmatpush.xpose.msra.mxu0 0.0
    %370 = vmatpush.xpose.msra.mxu0 0.0
    %371 = vmatpush.xpose.msra.mxu0 0.0
    %372 = vmatpush.xpose.msra.mxu0 0.0
    %373 = vmatpush.xpose.msra.mxu0 0.0
    %374 = vmatpush.xpose.msra.mxu0 %v358
    %375 = vmatpush.xpose.msra.mxu0 %v356
    %376 = vmatmul.f32.gmra.mxu0 %v352
    %v377 = vpop.f32.mrf.mxu0
    %v378 = vadd.f32 0.0, %v377
    %379 = vmatmul.f32.gmra.mxu0 %v354
    %v380 = vpop.f32.mrf.mxu0
    %v381 = vadd.f32 0.0, %v380
    %382 = vdwg.mxu0
    %v383 = vmul.f32 %v378, 0.35355338
    %v384 = vmul.f32 %v381, 0.35355338
    %v385 = vadd.f32 %v383, %v134
    %v386 = vadd.f32 %v384, %v135
    %v387 = vsel %vm286, %v385, -inf
    %388 = vmax.xlane.f32.xlu0 %v387
    %v389 = vpop.xlane.xlu0 %388
    %v390 = vsel %vm286, %v386, -inf
    %391 = vmax.xlane.f32.xlu0 %v390
    %v392 = vpop.xlane.xlu0 %391
    %v393 = vsub.f32 %v385, %v389
    %v394 = vsub.f32 %v386, %v392
    %v395 = vmul.f32 %v393, 1.442695
    %v396 = vpow.pop %v395
    %v397 = vmul.f32 %v394, 1.442695
    %v398 = vpow.pop %v397
    %v399 = vsel %vm286, %v396, 0.0
    %400 = vadd.xlane.f32.xlu0 %v399
    %v401 = vpop.xlane.xlu0 %400
    %v402 = vsel %vm286, %v398, 0.0
    %403 = vadd.xlane.f32.xlu0 %v402
    %v404 = vpop.xlane.xlu0 %403
    %v405 = vrcp.pop %v401
    %v406 = vrcp.pop %v404
    %v407 = vmul.f32 %v396, %v405
    %v408 = vmul.f32 %v398, %v406
    %409 = vrot.lane.b32.xlu0 %v239, 56
    %v410 = vpop.permute.xlu0 %409
    %411 = vrot.lane.b32.xlu0 %v242, 56
    %v412 = vpop.permute.xlu0 %411
    %v416 = vsel %vm286, %v407, 0
    %v419 = vsel %vm286, %v408, 0
    %421 = vmatpush.msra.mxu0 0.0
    %422 = vmatpush.msra.mxu0 0.0
    %423 = vmatpush.msra.mxu0 0.0
    %424 = vmatpush.msra.mxu0 0.0
    %425 = vmatpush.msra.mxu0 0.0
    %426 = vmatpush.msra.mxu0 0.0
    %427 = vmatpush.msra.mxu0 0.0
    %428 = vmatpush.msra.mxu0 0.0
    %429 = vmatpush.msra.mxu0 0.0
    %430 = vmatpush.msra.mxu0 0.0
    %431 = vmatpush.msra.mxu0 0.0
    %432 = vmatpush.msra.mxu0 0.0
    %433 = vmatpush.msra.mxu0 0.0
    %434 = vmatpush.msra.mxu0 0.0
    %435 = vmatpush.msra.mxu0 %v412
    %436 = vmatpush.msra.mxu0 %v410
    %437 = vmatmul.f32.gmra.mxu0 %v416
    %v438 = vpop.f32.mrf.mxu0
    %v439 = vadd.f32 0.0, %v438
    %440 = vmatmul.f32.gmra.mxu0 %v419
    %v441 = vpop.f32.mrf.mxu0
    %v442 = vadd.f32 0.0, %v441
    %443 = vdwg.mxu0
    %444 = vrot.lane.b32.xlu0 %v239, 112
    %v445 = vpop.permute.xlu0 %444
    %446 = vrot.lane.b32.xlu0 %v242, 112
    %v447 = vpop.permute.xlu0 %446
    %448 = vrot.lane.b32.xlu0 %v239, 80
    %v449 = vpop.permute.xlu0 %448
    %450 = vrot.lane.b32.xlu0 %v242, 80
    %v451 = vpop.permute.xlu0 %450
    %v452 = vsel %vm250, %v445, 0
    %v454 = vsel %vm250, %v447, 0
    %v456 = vsel %vm250, %v449, 0
    %v458 = vsel %vm250, %v451, 0
    %460 = vmatpush.xpose.msra.mxu0 0.0
    %461 = vmatpush.xpose.msra.mxu0 0.0
    %462 = vmatpush.xpose.msra.mxu0 0.0
    %463 = vmatpush.xpose.msra.mxu0 0.0
    %464 = vmatpush.xpose.msra.mxu0 0.0
    %465 = vmatpush.xpose.msra.mxu0 0.0
    %466 = vmatpush.xpose.msra.mxu0 0.0
    %467 = vmatpush.xpose.msra.mxu0 0.0
    %468 = vmatpush.xpose.msra.mxu0 0.0
    %469 = vmatpush.xpose.msra.mxu0 0.0
    %470 = vmatpush.xpose.msra.mxu0 0.0
    %471 = vmatpush.xpose.msra.mxu0 0.0
    %472 = vmatpush.xpose.msra.mxu0 0.0
    %473 = vmatpush.xpose.msra.mxu0 0.0
    %474 = vmatpush.xpose.msra.mxu0 %v458
    %475 = vmatpush.xpose.msra.mxu0 %v456
    %476 = vmatmul.f32.gmra.mxu0 %v452
    %v477 = vpop.f32.mrf.mxu0
    %v478 = vadd.f32 0.0, %v477
    %479 = vmatmul.f32.gmra.mxu0 %v454
    %v480 = vpop.f32.mrf.mxu0
    %v481 = vadd.f32 0.0, %v480
    %482 = vdwg.mxu0
    %v483 = vmul.f32 %v478, 0.35355338
    %v484 = vmul.f32 %v481, 0.35355338
    %v485 = vadd.f32 %v483, %v134
    %v486 = vadd.f32 %v484, %v135
    %v487 = vsel %vm286, %v485, -inf
    %488 = vmax.xlane.f32.xlu0 %v487
    %v489 = vpop.xlane.xlu0 %488
    %v490 = vsel %vm286, %v486, -inf
    %491 = vmax.xlane.f32.xlu0 %v490
    %v492 = vpop.xlane.xlu0 %491
    %v493 = vsub.f32 %v485, %v489
    %v494 = vsub.f32 %v486, %v492
    %v495 = vmul.f32 %v493, 1.442695
    %v496 = vpow.pop %v495
    %v497 = vmul.f32 %v494, 1.442695
    %v498 = vpow.pop %v497
    %v499 = vsel %vm286, %v496, 0.0
    %500 = vadd.xlane.f32.xlu0 %v499
    %v501 = vpop.xlane.xlu0 %500
    %v502 = vsel %vm286, %v498, 0.0
    %503 = vadd.xlane.f32.xlu0 %v502
    %v504 = vpop.xlane.xlu0 %503
    %v505 = vrcp.pop %v501
    %v506 = vrcp.pop %v504
    %v507 = vmul.f32 %v496, %v505
    %v508 = vmul.f32 %v498, %v506
    %509 = vrot.lane.b32.xlu0 %v239, 48
    %v510 = vpop.permute.xlu0 %509
    %511 = vrot.lane.b32.xlu0 %v242, 48
    %v512 = vpop.permute.xlu0 %511
    %v516 = vsel %vm286, %v507, 0
    %v519 = vsel %vm286, %v508, 0
    %521 = vmatpush.msra.mxu0 0.0
    %522 = vmatpush.msra.mxu0 0.0
    %523 = vmatpush.msra.mxu0 0.0
    %524 = vmatpush.msra.mxu0 0.0
    %525 = vmatpush.msra.mxu0 0.0
    %526 = vmatpush.msra.mxu0 0.0
    %527 = vmatpush.msra.mxu0 0.0
    %528 = vmatpush.msra.mxu0 0.0
    %529 = vmatpush.msra.mxu0 0.0
    %530 = vmatpush.msra.mxu0 0.0
    %531 = vmatpush.msra.mxu0 0.0
    %532 = vmatpush.msra.mxu0 0.0
    %533 = vmatpush.msra.mxu0 0.0
    %534 = vmatpush.msra.mxu0 0.0
    %535 = vmatpush.msra.mxu0 %v512
    %536 = vmatpush.msra.mxu0 %v510
    %537 = vmatmul.f32.gmra.mxu0 %v516
    %v538 = vpop.f32.mrf.mxu0
    %v539 = vadd.f32 0.0, %v538
    %540 = vmatmul.f32.gmra.mxu0 %v519
    %v541 = vpop.f32.mrf.mxu0
    %v542 = vadd.f32 0.0, %v541
    %543 = vdwg.mxu0
    %544 = vrot.lane.b32.xlu0 %v239, 104
    %v545 = vpop.permute.xlu0 %544
    %546 = vrot.lane.b32.xlu0 %v242, 104
    %v547 = vpop.permute.xlu0 %546
    %548 = vrot.lane.b32.xlu0 %v239, 72
    %v549 = vpop.permute.xlu0 %548
    %550 = vrot.lane.b32.xlu0 %v242, 72
    %v551 = vpop.permute.xlu0 %550
    %v552 = vsel %vm250, %v545, 0
    %v554 = vsel %vm250, %v547, 0
    %v556 = vsel %vm250, %v549, 0
    %v558 = vsel %vm250, %v551, 0
    %560 = vmatpush.xpose.msra.mxu0 0.0
    %561 = vmatpush.xpose.msra.mxu0 0.0
    %562 = vmatpush.xpose.msra.mxu0 0.0
    %563 = vmatpush.xpose.msra.mxu0 0.0
    %564 = vmatpush.xpose.msra.mxu0 0.0
    %565 = vmatpush.xpose.msra.mxu0 0.0
    %566 = vmatpush.xpose.msra.mxu0 0.0
    %567 = vmatpush.xpose.msra.mxu0 0.0
    %568 = vmatpush.xpose.msra.mxu0 0.0
    %569 = vmatpush.xpose.msra.mxu0 0.0
    %570 = vmatpush.xpose.msra.mxu0 0.0
    %571 = vmatpush.xpose.msra.mxu0 0.0
    %572 = vmatpush.xpose.msra.mxu0 0.0
    %573 = vmatpush.xpose.msra.mxu0 0.0
    %574 = vmatpush.xpose.msra.mxu0 %v558
    %575 = vmatpush.xpose.msra.mxu0 %v556
    %576 = vmatmul.f32.gmra.mxu0 %v552
    %v577 = vpop.f32.mrf.mxu0
    %v578 = vadd.f32 0.0, %v577
    %579 = vmatmul.f32.gmra.mxu0 %v554
    %v580 = vpop.f32.mrf.mxu0
    %v581 = vadd.f32 0.0, %v580
    %582 = vdwg.mxu0
    %v583 = vmul.f32 %v578, 0.35355338
    %v584 = vmul.f32 %v581, 0.35355338
    %v585 = vadd.f32 %v583, %v134
    %v586 = vadd.f32 %v584, %v135
    %v587 = vsel %vm286, %v585, -inf
    %588 = vmax.xlane.f32.xlu0 %v587
    %v589 = vpop.xlane.xlu0 %588
    %v590 = vsel %vm286, %v586, -inf
    %591 = vmax.xlane.f32.xlu0 %v590
    %v592 = vpop.xlane.xlu0 %591
    %v593 = vsub.f32 %v585, %v589
    %v594 = vsub.f32 %v586, %v592
    %v595 = vmul.f32 %v593, 1.442695
    %v596 = vpow.pop %v595
    %v597 = vmul.f32 %v594, 1.442695
    %v598 = vpow.pop %v597
    %v599 = vsel %vm286, %v596, 0.0
    %600 = vadd.xlane.f32.xlu0 %v599
    %v601 = vpop.xlane.xlu0 %600
    %v602 = vsel %vm286, %v598, 0.0
    %603 = vadd.xlane.f32.xlu0 %v602
    %v604 = vpop.xlane.xlu0 %603
    %v605 = vrcp.pop %v601
    %v606 = vrcp.pop %v604
    %v607 = vmul.f32 %v596, %v605
    %v608 = vmul.f32 %v598, %v606
    %609 = vrot.lane.b32.xlu0 %v239, 40
    %v610 = vpop.permute.xlu0 %609
    %611 = vrot.lane.b32.xlu0 %v242, 40
    %v612 = vpop.permute.xlu0 %611
    %v616 = vsel %vm286, %v607, 0
    %v619 = vsel %vm286, %v608, 0
    %621 = vmatpush.msra.mxu0 0.0
    %622 = vmatpush.msra.mxu0 0.0
    %623 = vmatpush.msra.mxu0 0.0
    %624 = vmatpush.msra.mxu0 0.0
    %625 = vmatpush.msra.mxu0 0.0
    %626 = vmatpush.msra.mxu0 0.0
    %627 = vmatpush.msra.mxu0 0.0
    %628 = vmatpush.msra.mxu0 0.0
    %629 = vmatpush.msra.mxu0 0.0
    %630 = vmatpush.msra.mxu0 0.0
    %631 = vmatpush.msra.mxu0 0.0
    %632 = vmatpush.msra.mxu0 0.0
    %633 = vmatpush.msra.mxu0 0.0
    %634 = vmatpush.msra.mxu0 0.0
    %635 = vmatpush.msra.mxu0 %v612
    %636 = vmatpush.msra.mxu0 %v610
    %637 = vmatmul.f32.gmra.mxu0 %v616
    %v638 = vpop.f32.mrf.mxu0
    %v639 = vadd.f32 0.0, %v638
    %640 = vmatmul.f32.gmra.mxu0 %v619
    %v641 = vpop.f32.mrf.mxu0
    %v642 = vadd.f32 0.0, %v641
    %643 = vdwg.mxu0
    %646 = vrot.lane.b32.xlu0 %v439, 8
    %v647 = vpop.permute.xlu0 %646
    %648 = vrot.lane.b32.xlu0 %v442, 8
    %v649 = vpop.permute.xlu0 %648
    %654 = vrot.lane.b32.xlu0 %v539, 16
    %v655 = vpop.permute.xlu0 %654
    %656 = vrot.lane.b32.xlu0 %v542, 16
    %v657 = vpop.permute.xlu0 %656
    %662 = vrot.lane.b32.xlu0 %v639, 24
    %v663 = vpop.permute.xlu0 %662
    %664 = vrot.lane.b32.xlu0 %v642, 24
    %v665 = vpop.permute.xlu0 %664
    %v668 = vsel %vm250, %v339, %v647
    %v669 = vsel %vm250, %v342, %v649
    %v670 = vsel %vm286, %v668, %v655
    %v671 = vsel %vm286, %v669, %v657
    %vm672 = vcmask 195584
    %v673 = vsel %vm672, %v670, %v663
    %v674 = vsel %vm672, %v671, %v665
    %v675 = vld [vmem:[%s4] sm:$0xff]
    %v676 = vld [vmem:[%s4 + $0x8] sm:$0xff]
    %v677 = vld [vmem:[%s4 + $0x10] sm:$0xff]
    %v678 = vld [vmem:[%s4 + $0x18] sm:$0xff]
    %v679 = vld [vmem:[#allocation7] sm:$0x1]
    %v681 = vperm.slane %v679, 0
    %v684 = vsel %vm138, %v673, 0
    %v687 = vsel %vm138, %v674, 0
    %689 = vmatpush.msra.mxu0 0.0
    %690 = vmatpush.msra.mxu0 0.0
    %691 = vmatpush.msra.mxu0 0.0
    %692 = vmatpush.msra.mxu0 0.0
    %693 = vmatpush.msra.mxu0 0.0
    %694 = vmatpush.msra.mxu0 0.0
    %695 = vmatpush.msra.mxu0 0.0
    %696 = vmatpush.msra.mxu0 0.0
    %697 = vmatpush.msra.mxu0 0.0
    %698 = vmatpush.msra.mxu0 0.0
    %699 = vmatpush.msra.mxu0 0.0
    %700 = vmatpush.msra.mxu0 0.0
    %701 = vmatpush.msra.mxu0 %v678
    %702 = vmatpush.msra.mxu0 %v677
    %703 = vmatpush.msra.mxu0 %v676
    %704 = vmatpush.msra.mxu0 %v675
    %705 = vmatmul.f32.gmra.mxu0 %v684
    %v706 = vpop.f32.mrf.mxu0
    %v707 = vadd.f32 %v681, %v706
    %708 = vmatmul.f32.gmra.mxu0 %v687
    %v709 = vpop.f32.mrf.mxu0
    %v710 = vadd.f32 %v681, %v709
    %711 = vdwg.mxu0
    %v712 = vadd.f32 %v132, %v707
    %v713 = vadd.f32 %v133, %v710
    %v714 = vld [vmem:[%s12] sm:$0x1]
    %v715 = vld [vmem:[#allocation10] sm:$0x1]
    %v716 = vsel %vm138, %v712, 0.0
    %717 = vadd.xlane.f32.xlu0 %v716
    %v718 = vpop.xlane.xlu0 %717
    %v719 = vsel %vm138, %v713, 0.0
    %720 = vadd.xlane.f32.xlu0 %v719
    %v721 = vpop.xlane.xlu0 %720
    %v722 = vmul.f32 %v718, %v151
    %v723 = vmul.f32 %v721, %v151
    %v724 = vsub.f32 %v712, %v722
    %v725 = vsub.f32 %v713, %v723
    %v726 = vmul.f32 %v724, %v724
    %v727 = vmul.f32 %v725, %v725
    %v728 = vsel %vm138, %v726, 0.0
    %729 = vadd.xlane.f32.xlu0 %v728
    %v730 = vpop.xlane.xlu0 %729
    %v731 = vsel %vm138, %v727, 0.0
    %732 = vadd.xlane.f32.xlu0 %v731
    %v733 = vpop.xlane.xlu0 %732
    %v734 = vmul.f32 %v730, %v170
    %v735 = vmul.f32 %v733, %v170
    %v736 = vadd.f32 %v734, 1e-06
    %v737 = vadd.f32 %v735, 1e-06
    %v738 = vrsqrt.pop %v736
    %v739 = vmul.f32 %v738, %v736
    %v740 = vmul.f32 %v739, %v738
    %v741 = vmul.f32 0.5, %v740
    %v742 = vsub.f32 1.5, %v741
    %v743 = vmul.f32 %v738, %v742
    %vm744 = vweird.f32 %v736
    %vm745 = vweird.f32 %v738
    %vm746 = vmor %vm744, %vm745
    %v747 = vsel %vm746, %v738, %v743
    %v748 = vrsqrt.pop %v737
    %v749 = vmul.f32 %v748, %v737
    %v750 = vmul.f32 %v749, %v748
    %v751 = vmul.f32 0.5, %v750
    %v752 = vsub.f32 1.5, %v751
    %v753 = vmul.f32 %v748, %v752
    %vm754 = vweird.f32 %v737
    %vm755 = vweird.f32 %v748
    %vm756 = vmor %vm754, %vm755
    %v757 = vsel %vm756, %v748, %v753
    %v758 = vmul.f32 %v724, %v747
    %v759 = vmul.f32 %v725, %v757
    %v761 = vperm.slane %v714, 0
    %v763 = vmul.f32 %v761, %v758
    %v764 = vmul.f32 %v761, %v759
    %v766 = vperm.slane %v715, 0
    %v768 = vadd.f32 %v763, %v766
    %v769 = vadd.f32 %v764, %v766
    %v770 = vld [vmem:[%s8] sm:$0xff]
    %v771 = vld [vmem:[%s8 + $0x8] sm:$0xff]
    %v772 = vld [vmem:[%s8 + $0x10] sm:$0xff]
    %v773 = vld [vmem:[%s8 + $0x18] sm:$0xff]
    %v774 = vld [vmem:[%s9] sm:$0x1]
    %v776 = vperm.slane %v774, 0
    %v779 = vsel %vm138, %v768, 0
    %v782 = vsel %vm138, %v769, 0
    %784 = vmatpush.msra.mxu0 0.0
    %785 = vmatpush.msra.mxu0 0.0
    %786 = vmatpush.msra.mxu0 0.0
    %787 = vmatpush.msra.mxu0 0.0
    %788 = vmatpush.msra.mxu0 0.0
    %789 = vmatpush.msra.mxu0 0.0
    %790 = vmatpush.msra.mxu0 0.0
    %791 = vmatpush.msra.mxu0 0.0
    %792 = vmatpush.msra.mxu0 0.0
    %793 = vmatpush.msra.mxu0 0.0
    %794 = vmatpush.msra.mxu0 0.0
    %795 = vmatpush.msra.mxu0 0.0
    %796 = vmatpush.msra.mxu0 %v773
    %797 = vmatpush.msra.mxu0 %v772
    %798 = vmatpush.msra.mxu0 %v771
    %799 = vmatpush.msra.mxu0 %v770
    %800 = vmatmul.f32.gmra.mxu0 %v779
    %v801 = vpop.f32.mrf.mxu0
    %v802 = vadd.f32 %v776, %v801
    %803 = vmatmul.f32.gmra.mxu0 %v782
    %v804 = vpop.f32.mrf.mxu0
    %v805 = vadd.f32 %v776, %v804
    %806 = vdwg.mxu0
    %v807 = vmax.f32 %v802, 0.0
    %v808 = vmax.f32 %v805, 0.0
    %v809 = vld [vmem:[%s10] sm:$0xff]
    %v810 = vld [vmem:[%s10 + $0x8] sm:$0xff]
    %v811 = vld [vmem:[%s10 + $0x10] sm:$0xff]
    %v812 = vld [vmem:[%s10 + $0x18] sm:$0xff]
    %v813 = vld [vmem:[%s10 + $0x20] sm:$0xff]
    %v814 = vld [vmem:[%s10 + $0x28] sm:$0xff]
    %v815 = vld [vmem:[%s10 + $0x30] sm:$0xff]
    %v816 = vld [vmem:[%s10 + $0x38] sm:$0xff]
    %vm817 = vcmask 523264
    %v819 = vsel %vm817, %v807, 0
    %v822 = vsel %vm817, %v808, 0
    %824 = vmatpush.msra.mxu0 0.0
    %825 = vmatpush.msra.mxu0 0.0
    %826 = vmatpush.msra.mxu0 0.0
    %827 = vmatpush.msra.mxu0 0.0
    %828 = vmatpush.msra.mxu0 0.0
    %829 = vmatpush.msra.mxu0 0.0
    %830 = vmatpush.msra.mxu0 0.0
    %831 = vmatpush.msra.mxu0 0.0
    %832 = vmatpush.msra.mxu0 %v816
    %833 = vmatpush.msra.mxu0 %v815
    %834 = vmatpush.msra.mxu0 %v814
    %835 = vmatpush.msra.mxu0 %v813
    %836 = vmatpush.msra.mxu0 %v812
    %837 = vmatpush.msra.mxu0 %v811
    %838 = vmatpush.msra.mxu0 %v810
    %839 = vmatpush.msra.mxu0 %v809
    %840 = vmatmul.f32.gmra.mxu0 %v819
    %v841 = vpop.f32.mrf.mxu0
    %v842 = vadd.f32 0.0, %v841
    %843 = vmatmul.f32.gmra.mxu0 %v822
    %v844 = vpop.f32.mrf.mxu0
    %v845 = vadd.f32 0.0, %v844
    %846 = vdwg.mxu0
    %v847 = vadd.f32 %v712, %v842
    %v848 = vadd.f32 %v713, %v845
    %v849 = vld [vmem:[%s11] sm:$0x1]
    %v851 = vperm.slane %v849, 0
    %v853 = vadd.f32 %v847, %v851
    %v854 = vadd.f32 %v848, %v851
    %s855 = scalar_lea.vmem %s6, 1
    %v856 = vld [vmem:[%s855] sm:$0x1]
    %s857 = scalar_lea.vmem [#allocation8], 1
    %v858 = vld [vmem:[%s857] sm:$0x1]
    %v859 = vsel %vm138, %v853, 0.0
    %860 = vadd.xlane.f32.xlu0 %v859
    %v861 = vpop.xlane.xlu0 %860
    %v862 = vsel %vm138, %v854, 0.0
    %863 = vadd.xlane.f32.xlu0 %v862
    %v864 = vpop.xlane.xlu0 %863
    %v865 = vmul.f32 %v861, %v151
    %v866 = vmul.f32 %v864, %v151
    %v867 = vsub.f32 %v853, %v865
    %v868 = vsub.f32 %v854, %v866
    %v869 = vmul.f32 %v867, %v867
    %v870 = vmul.f32 %v868, %v868
    %v871 = vsel %vm138, %v869, 0.0
    %872 = vadd.xlane.f32.xlu0 %v871
    %v873 = vpop.xlane.xlu0 %872
    %v874 = vsel %vm138, %v870, 0.0
    %875 = vadd.xlane.f32.xlu0 %v874
    %v876 = vpop.xlane.xlu0 %875
    %v877 = vmul.f32 %v873, %v170
    %v878 = vmul.f32 %v876, %v170
    %v879 = vadd.f32 %v877, 1e-06
    %v880 = vadd.f32 %v878, 1e-06
    %v881 = vrsqrt.pop %v879
    %v882 = vmul.f32 %v881, %v879
    %v883 = vmul.f32 %v882, %v881
    %v884 = vmul.f32 0.5, %v883
    %v885 = vsub.f32 1.5, %v884
    %v886 = vmul.f32 %v881, %v885
    %vm887 = vweird.f32 %v879
    %vm888 = vweird.f32 %v881
    %vm889 = vmor %vm887, %vm888
    %v890 = vsel %vm889, %v881, %v886
    %v891 = vrsqrt.pop %v880
    %v892 = vmul.f32 %v891, %v880
    %v893 = vmul.f32 %v892, %v891
    %v894 = vmul.f32 0.5, %v893
    %v895 = vsub.f32 1.5, %v894
    %v896 = vmul.f32 %v891, %v895
    %vm897 = vweird.f32 %v880
    %vm898 = vweird.f32 %v891
    %vm899 = vmor %vm897, %vm898
    %v900 = vsel %vm899, %v891, %v896
    %v901 = vmul.f32 %v867, %v890
    %v902 = vmul.f32 %v868, %v900
    %v904 = vperm.slane %v856, 0
    %v906 = vmul.f32 %v904, %v901
    %v907 = vmul.f32 %v904, %v902
    %v909 = vperm.slane %v858, 0
    %v911 = vadd.f32 %v906, %v909
    %v912 = vadd.f32 %v907, %v909
    %s913 = scalar_lea.vmem %s2, 32
    %v914 = vld [vmem:[%s913] sm:$0xff]
    %v915 = vld [vmem:[%s913 + $0x8] sm:$0xff]
    %v916 = vld [vmem:[%s913 + $0x10] sm:$0xff]
    %v917 = vld [vmem:[%s913 + $0x18] sm:$0xff]
    %s918 = scalar_lea.vmem %s3, 1
    %v919 = vld [vmem:[%s918] sm:$0x1]
    %v921 = vperm.slane %v919, 0
    %v924 = vsel %vm138, %v911, 0
    %v927 = vsel %vm138, %v912, 0
    %929 = vmatpush.msra.mxu0 0.0
    %930 = vmatpush.msra.mxu0 0.0
    %931 = vmatpush.msra.mxu0 0.0
    %932 = vmatpush.msra.mxu0 0.0
    %933 = vmatpush.msra.mxu0 0.0
    %934 = vmatpush.msra.mxu0 0.0
    %935 = vmatpush.msra.mxu0 0.0
    %936 = vmatpush.msra.mxu0 0.0
    %937 = vmatpush.msra.mxu0 0.0
    %938 = vmatpush.msra.mxu0 0.0
    %939 = vmatpush.msra.mxu0 0.0
    %940 = vmatpush.msra.mxu0 0.0
    %941 = vmatpush.msra.mxu0 %v917
    %942 = vmatpush.msra.mxu0 %v916
    %943 = vmatpush.msra.mxu0 %v915
    %944 = vmatpush.msra.mxu0 %v914
    %945 = vmatmul.f32.gmra.mxu0 %v924
    %v946 = vpop.f32.mrf.mxu0
    %v947 = vadd.f32 %v921, %v946
    %948 = vmatmul.f32.gmra.mxu0 %v927
    %v949 = vpop.f32.mrf.mxu0
    %v950 = vadd.f32 %v921, %v949
    %951 = vdwg.mxu0
    %954 = vrot.lane.b32.xlu0 %v947, 96
    %v955 = vpop.permute.xlu0 %954
    %956 = vrot.lane.b32.xlu0 %v950, 96
    %v957 = vpop.permute.xlu0 %956
    %v958 = vsel %vm250, %v947, 0
    %v960 = vsel %vm250, %v950, 0
    %v962 = vsel %vm250, %v955, 0
    %v964 = vsel %vm250, %v957, 0
    %966 = vmatpush.xpose.msra.mxu0 0.0
    %967 = vmatpush.xpose.msra.mxu0 0.0
    %968 = vmatpush.xpose.msra.mxu0 0.0
    %969 = vmatpush.xpose.msra.mxu0 0.0
    %970 = vmatpush.xpose.msra.mxu0 0.0
    %971 = vmatpush.xpose.msra.mxu0 0.0
    %972 = vmatpush.xpose.msra.mxu0 0.0
    %973 = vmatpush.xpose.msra.mxu0 0.0
    %974 = vmatpush.xpose.msra.mxu0 0.0
    %975 = vmatpush.xpose.msra.mxu0 0.0
    %976 = vmatpush.xpose.msra.mxu0 0.0
    %977 = vmatpush.xpose.msra.mxu0 0.0
    %978 = vmatpush.xpose.msra.mxu0 0.0
    %979 = vmatpush.xpose.msra.mxu0 0.0
    %980 = vmatpush.xpose.msra.mxu0 %v964
    %981 = vmatpush.xpose.msra.mxu0 %v962
    %982 = vmatmul.f32.gmra.mxu0 %v958
    %v983 = vpop.f32.mrf.mxu0
    %v984 = vadd.f32 0.0, %v983
    %985 = vmatmul.f32.gmra.mxu0 %v960
    %v986 = vpop.f32.mrf.mxu0
    %v987 = vadd.f32 0.0, %v986
    %988 = vdwg.mxu0
    %v989 = vmul.f32 %v984, 0.35355338
    %v990 = vmul.f32 %v987, 0.35355338
    %v991 = vadd.f32 %v989, %v134
    %v992 = vadd.f32 %v990, %v135
    %v993 = vsel %vm286, %v991, -inf
    %994 = vmax.xlane.f32.xlu0 %v993
    %v995 = vpop.xlane.xlu0 %994
    %v996 = vsel %vm286, %v992, -inf
    %997 = vmax.xlane.f32.xlu0 %v996
    %v998 = vpop.xlane.xlu0 %997
    %v999 = vsub.f32 %v991, %v995
    %v1000 = vsub.f32 %v992, %v998
    %v1001 = vmul.f32 %v999, 1.442695
    %v1002 = vpow.pop %v1001
    %v1003 = vmul.f32 %v1000, 1.442695
    %v1004 = vpow.pop %v1003
    %v1005 = vsel %vm286, %v1002, 0.0
    %1006 = vadd.xlane.f32.xlu0 %v1005
    %v1007 = vpop.xlane.xlu0 %1006
    %v1008 = vsel %vm286, %v1004, 0.0
    %1009 = vadd.xlane.f32.xlu0 %v1008
    %v1010 = vpop.xlane.xlu0 %1009
    %v1011 = vrcp.pop %v1007
    %v1012 = vrcp.pop %v1010
    %v1013 = vmul.f32 %v1002, %v1011
    %v1014 = vmul.f32 %v1004, %v1012
    %1015 = vrot.lane.b32.xlu0 %v947, 64
    %v1016 = vpop.permute.xlu0 %1015
    %1017 = vrot.lane.b32.xlu0 %v950, 64
    %v1018 = vpop.permute.xlu0 %1017
    %v1022 = vsel %vm286, %v1013, 0
    %v1025 = vsel %vm286, %v1014, 0
    %1027 = vmatpush.msra.mxu0 0.0
    %1028 = vmatpush.msra.mxu0 0.0
    %1029 = vmatpush.msra.mxu0 0.0
    %1030 = vmatpush.msra.mxu0 0.0
    %1031 = vmatpush.msra.mxu0 0.0
    %1032 = vmatpush.msra.mxu0 0.0
    %1033 = vmatpush.msra.mxu0 0.0
    %1034 = vmatpush.msra.mxu0 0.0
    %1035 = vmatpush.msra.mxu0 0.0
    %1036 = vmatpush.msra.mxu0 0.0
    %1037 = vmatpush.msra.mxu0 0.0
    %1038 = vmatpush.msra.mxu0 0.0
    %1039 = vmatpush.msra.mxu0 0.0
    %1040 = vmatpush.msra.mxu0 0.0
    %1041 = vmatpush.msra.mxu0 %v1018
    %1042 = vmatpush.msra.mxu0 %v1016
    %1043 = vmatmul.f32.gmra.mxu0 %v1022
    %v1044 = vpop.f32.mrf.mxu0
    %v1045 = vadd.f32 0.0, %v1044
    %1046 = vmatmul.f32.gmra.mxu0 %v1025
    %v1047 = vpop.f32.mrf.mxu0
    %v1048 = vadd.f32 0.0, %v1047
    %1049 = vdwg.mxu0
    %1050 = vrot.lane.b32.xlu0 %v947, 120
    %v1051 = vpop.permute.xlu0 %1050
    %1052 = vrot.lane.b32.xlu0 %v950, 120
    %v1053 = vpop.permute.xlu0 %1052
    %1054 = vrot.lane.b32.xlu0 %v947, 88
    %v1055 = vpop.permute.xlu0 %1054
    %1056 = vrot.lane.b32.xlu0 %v950, 88
    %v1057 = vpop.permute.xlu0 %1056
    %v1058 = vsel %vm250, %v1051, 0
    %v1060 = vsel %vm250, %v1053, 0
    %v1062 = vsel %vm250, %v1055, 0
    %v1064 = vsel %vm250, %v1057, 0
    %1066 = vmatpush.xpose.msra.mxu0 0.0
    %1067 = vmatpush.xpose.msra.mxu0 0.0
    %1068 = vmatpush.xpose.msra.mxu0 0.0
    %1069 = vmatpush.xpose.msra.mxu0 0.0
    %1070 = vmatpush.xpose.msra.mxu0 0.0
    %1071 = vmatpush.xpose.msra.mxu0 0.0
    %1072 = vmatpush.xpose.msra.mxu0 0.0
    %1073 = vmatpush.xpose.msra.mxu0 0.0
    %1074 = vmatpush.xpose.msra.mxu0 0.0
    %1075 = vmatpush.xpose.msra.mxu0 0.0
    %1076 = vmatpush.xpose.msra.mxu0 0.0
    %1077 = vmatpush.xpose.msra.mxu0 0.0
    %1078 = vmatpush.xpose.msra.mxu0 0.0
    %1079 = vmatpush.xpose.msra.mxu0 0.0
    %1080 = vmatpush.xpose.msra.mxu0 %v1064
    %1081 = vmatpush.xpose.msra.mxu0 %v1062
    %1082 = vmatmul.f32.gmra.mxu0 %v1058
    %v1083 = vpop.f32.mrf.mxu0
    %v1084 = vadd.f32 0.0, %v1083
    %1085 = vmatmul.f32.gmra.mxu0 %v1060
    %v1086 = vpop.f32.mrf.mxu0
    %v1087 = vadd.f32 0.0, %v1086
    %1088 = vdwg.mxu0
    %v1089 = vmul.f32 %v1084, 0.35355338
    %v1090 = vmul.f32 %v1087, 0.35355338
    %v1091 = vadd.f32 %v1089, %v134
    %v1092 = vadd.f32 %v1090, %v135
    %v1093 = vsel %vm286, %v1091, -inf
    %1094 = vmax.xlane.f32.xlu0 %v1093
    %v1095 = vpop.xlane.xlu0 %1094
    %v1096 = vsel %vm286, %v1092, -inf
    %1097 = vmax.xlane.f32.xlu0 %v1096
    %v1098 = vpop.xlane.xlu0 %1097
    %v1099 = vsub.f32 %v1091, %v1095
    %v1100 = vsub.f32 %v1092, %v1098
    %v1101 = vmul.f32 %v1099, 1.442695
    %v1102 = vpow.pop %v1101
    %v1103 = vmul.f32 %v1100, 1.442695
    %v1104 = vpow.pop %v1103
    %v1105 = vsel %vm286, %v1102, 0.0
    %1106 = vadd.xlane.f32.xlu0 %v1105
    %v1107 = vpop.xlane.xlu0 %1106
    %v1108 = vsel %vm286, %v1104, 0.0
    %1109 = vadd.xlane.f32.xlu0 %v1108
    %v1110 = vpop.xlane.xlu0 %1109
    %v1111 = vrcp.pop %v1107
    %v1112 = vrcp.pop %v1110
    %v1113 = vmul.f32 %v1102, %v1111
    %v1114 = vmul.f32 %v1104, %v1112
    %1115 = vrot.lane.b32.xlu0 %v947, 56
    %v1116 = vpop.permute.xlu0 %1115
    %1117 = vrot.lane.b32.xlu0 %v950, 56
    %v1118 = vpop.permute.xlu0 %1117
    %v1122 = vsel %vm286, %v1113, 0
    %v1125 = vsel %vm286, %v1114, 0
    %1127 = vmatpush.msra.mxu0 0.0
    %1128 = vmatpush.msra.mxu0 0.0
    %1129 = vmatpush.msra.mxu0 0.0
    %1130 = vmatpush.msra.mxu0 0.0
    %1131 = vmatpush.msra.mxu0 0.0
    %1132 = vmatpush.msra.mxu0 0.0
    %1133 = vmatpush.msra.mxu0 0.0
    %1134 = vmatpush.msra.mxu0 0.0
    %1135 = vmatpush.msra.mxu0 0.0
    %1136 = vmatpush.msra.mxu0 0.0
    %1137 = vmatpush.msra.mxu0 0.0
    %1138 = vmatpush.msra.mxu0 0.0
    %1139 = vmatpush.msra.mxu0 0.0
    %1140 = vmatpush.msra.mxu0 0.0
    %1141 = vmatpush.msra.mxu0 %v1118
    %1142 = vmatpush.msra.mxu0 %v1116
    %1143 = vmatmul.f32.gmra.mxu0 %v1122
    %v1144 = vpop.f32.mrf.mxu0
    %v1145 = vadd.f32 0.0, %v1144
    %1146 = vmatmul.f32.gmra.mxu0 %v1125
    %v1147 = vpop.f32.mrf.mxu0
    %v1148 = vadd.f32 0.0, %v1147
    %1149 = vdwg.mxu0
    %1150 = vrot.lane.b32.xlu0 %v947, 112
    %v1151 = vpop.permute.xlu0 %1150
    %1152 = vrot.lane.b32.xlu0 %v950, 112
    %v1153 = vpop.permute.xlu0 %1152
    %1154 = vrot.lane.b32.xlu0 %v947, 80
    %v1155 = vpop.permute.xlu0 %1154
    %1156 = vrot.lane.b32.xlu0 %v950, 80
    %v1157 = vpop.permute.xlu0 %1156
    %v1158 = vsel %vm250, %v1151, 0
    %v1160 = vsel %vm250, %v1153, 0
    %v1162 = vsel %vm250, %v1155, 0
    %v1164 = vsel %vm250, %v1157, 0
    %1166 = vmatpush.xpose.msra.mxu0 0.0
    %1167 = vmatpush.xpose.msra.mxu0 0.0
    %1168 = vmatpush.xpose.msra.mxu0 0.0
    %1169 = vmatpush.xpose.msra.mxu0 0.0
    %1170 = vmatpush.xpose.msra.mxu0 0.0
    %1171 = vmatpush.xpose.msra.mxu0 0.0
    %1172 = vmatpush.xpose.msra.mxu0 0.0
    %1173 = vmatpush.xpose.msra.mxu0 0.0
    %1174 = vmatpush.xpose.msra.mxu0 0.0
    %1175 = vmatpush.xpose.msra.mxu0 0.0
    %1176 = vmatpush.xpose.msra.mxu0 0.0
    %1177 = vmatpush.xpose.msra.mxu0 0.0
    %1178 = vmatpush.xpose.msra.mxu0 0.0
    %1179 = vmatpush.xpose.msra.mxu0 0.0
    %1180 = vmatpush.xpose.msra.mxu0 %v1164
    %1181 = vmatpush.xpose.msra.mxu0 %v1162
    %1182 = vmatmul.f32.gmra.mxu0 %v1158
    %v1183 = vpop.f32.mrf.mxu0
    %v1184 = vadd.f32 0.0, %v1183
    %1185 = vmatmul.f32.gmra.mxu0 %v1160
    %v1186 = vpop.f32.mrf.mxu0
    %v1187 = vadd.f32 0.0, %v1186
    %1188 = vdwg.mxu0
    %v1189 = vmul.f32 %v1184, 0.35355338
    %v1190 = vmul.f32 %v1187, 0.35355338
    %v1191 = vadd.f32 %v1189, %v134
    %v1192 = vadd.f32 %v1190, %v135
    %v1193 = vsel %vm286, %v1191, -inf
    %1194 = vmax.xlane.f32.xlu0 %v1193
    %v1195 = vpop.xlane.xlu0 %1194
    %v1196 = vsel %vm286, %v1192, -inf
    %1197 = vmax.xlane.f32.xlu0 %v1196
    %v1198 = vpop.xlane.xlu0 %1197
    %v1199 = vsub.f32 %v1191, %v1195
    %v1200 = vsub.f32 %v1192, %v1198
    %v1201 = vmul.f32 %v1199, 1.442695
    %v1202 = vpow.pop %v1201
    %v1203 = vmul.f32 %v1200, 1.442695
    %v1204 = vpow.pop %v1203
    %v1205 = vsel %vm286, %v1202, 0.0
    %1206 = vadd.xlane.f32.xlu0 %v1205
    %v1207 = vpop.xlane.xlu0 %1206
    %v1208 = vsel %vm286, %v1204, 0.0
    %1209 = vadd.xlane.f32.xlu0 %v1208
    %v1210 = vpop.xlane.xlu0 %1209
    %v1211 = vrcp.pop %v1207
    %v1212 = vrcp.pop %v1210
    %v1213 = vmul.f32 %v1202, %v1211
    %v1214 = vmul.f32 %v1204, %v1212
    %1215 = vrot.lane.b32.xlu0 %v947, 48
    %v1216 = vpop.permute.xlu0 %1215
    %1217 = vrot.lane.b32.xlu0 %v950, 48
    %v1218 = vpop.permute.xlu0 %1217
    %v1222 = vsel %vm286, %v1213, 0
    %v1225 = vsel %vm286, %v1214, 0
    %1227 = vmatpush.msra.mxu0 0.0
    %1228 = vmatpush.msra.mxu0 0.0
    %1229 = vmatpush.msra.mxu0 0.0
    %1230 = vmatpush.msra.mxu0 0.0
    %1231 = vmatpush.msra.mxu0 0.0
    %1232 = vmatpush.msra.mxu0 0.0
    %1233 = vmatpush.msra.mxu0 0.0
    %1234 = vmatpush.msra.mxu0 0.0
    %1235 = vmatpush.msra.mxu0 0.0
    %1236 = vmatpush.msra.mxu0 0.0
    %1237 = vmatpush.msra.mxu0 0.0
    %1238 = vmatpush.msra.mxu0 0.0
    %1239 = vmatpush.msra.mxu0 0.0
    %1240 = vmatpush.msra.mxu0 0.0
    %1241 = vmatpush.msra.mxu0 %v1218
    %1242 = vmatpush.msra.mxu0 %v1216
    %1243 = vmatmul.f32.gmra.mxu0 %v1222
    %v1244 = vpop.f32.mrf.mxu0
    %v1245 = vadd.f32 0.0, %v1244
    %1246 = vmatmul.f32.gmra.mxu0 %v1225
    %v1247 = vpop.f32.mrf.mxu0
    %v1248 = vadd.f32 0.0, %v1247
    %1249 = vdwg.mxu0
    %1250 = vrot.lane.b32.xlu0 %v947, 104
    %v1251 = vpop.permute.xlu0 %1250
    %1252 = vrot.lane.b32.xlu0 %v950, 104
    %v1253 = vpop.permute.xlu0 %1252
    %1254 = vrot.lane.b32.xlu0 %v947, 72
    %v1255 = vpop.permute.xlu0 %1254
    %1256 = vrot.lane.b32.xlu0 %v950, 72
    %v1257 = vpop.permute.xlu0 %1256
    %v1258 = vsel %vm250, %v1251, 0
    %v1260 = vsel %vm250, %v1253, 0
    %v1262 = vsel %vm250, %v1255, 0
    %v1264 = vsel %vm250, %v1257, 0
    %1266 = vmatpush.xpose.msra.mxu0 0.0
    %1267 = vmatpush.xpose.msra.mxu0 0.0
    %1268 = vmatpush.xpose.msra.mxu0 0.0
    %1269 = vmatpush.xpose.msra.mxu0 0.0
    %1270 = vmatpush.xpose.msra.mxu0 0.0
    %1271 = vmatpush.xpose.msra.mxu0 0.0
    %1272 = vmatpush.xpose.msra.mxu0 0.0
    %1273 = vmatpush.xpose.msra.mxu0 0.0
    %1274 = vmatpush.xpose.msra.mxu0 0.0
    %1275 = vmatpush.xpose.msra.mxu0 0.0
    %1276 = vmatpush.xpose.msra.mxu0 0.0
    %1277 = vmatpush.xpose.msra.mxu0 0.0
    %1278 = vmatpush.xpose.msra.mxu0 0.0
    %1279 = vmatpush.xpose.msra.mxu0 0.0
    %1280 = vmatpush.xpose.msra.mxu0 %v1264
    %1281 = vmatpush.xpose.msra.mxu0 %v1262
    %1282 = vmatmul.f32.gmra.mxu0 %v1258
    %v1283 = vpop.f32.mrf.mxu0
    %v1284 = vadd.f32 0.0, %v1283
    %1285 = vmatmul.f32.gmra.mxu0 %v1260
    %v1286 = vpop.f32.mrf.mxu0
    %v1287 = vadd.f32 0.0, %v1286
    %1288 = vdwg.mxu0
    %v1289 = vmul.f32 %v1284, 0.35355338
    %v1290 = vmul.f32 %v1287, 0.35355338
    %v1291 = vadd.f32 %v1289, %v134
    %v1292 = vadd.f32 %v1290, %v135
    %v1293 = vsel %vm286, %v1291, -inf
    %1294 = vmax.xlane.f32.xlu0 %v1293
    %v1295 = vpop.xlane.xlu0 %1294
    %v1296 = vsel %vm286, %v1292, -inf
    %1297 = vmax.xlane.f32.xlu0 %v1296
    %v1298 = vpop.xlane.xlu0 %1297
    %v1299 = vsub.f32 %v1291, %v1295
    %v1300 = vsub.f32 %v1292, %v1298
    %v1301 = vmul.f32 %v1299, 1.442695
    %v1302 = vpow.pop %v1301
    %v1303 = vmul.f32 %v1300, 1.442695
    %v1304 = vpow.pop %v1303
    %v1305 = vsel %vm286, %v1302, 0.0
    %1306 = vadd.xlane.f32.xlu0 %v1305
    %v1307 = vpop.xlane.xlu0 %1306
    %v1308 = vsel %vm286, %v1304, 0.0
    %1309 = vadd.xlane.f32.xlu0 %v1308
    %v1310 = vpop.xlane.xlu0 %1309
    %v1311 = vrcp.pop %v1307
    %v1312 = vrcp.pop %v1310
    %v1313 = vmul.f32 %v1302, %v1311
    %v1314 = vmul.f32 %v1304, %v1312
    %1315 = vrot.lane.b32.xlu0 %v947, 40
    %v1316 = vpop.permute.xlu0 %1315
    %1317 = vrot.lane.b32.xlu0 %v950, 40
    %v1318 = vpop.permute.xlu0 %1317
    %v1322 = vsel %vm286, %v1313, 0
    %v1325 = vsel %vm286, %v1314, 0
    %1327 = vmatpush.msra.mxu0 0.0
    %1328 = vmatpush.msra.mxu0 0.0
    %1329 = vmatpush.msra.mxu0 0.0
    %1330 = vmatpush.msra.mxu0 0.0
    %1331 = vmatpush.msra.mxu0 0.0
    %1332 = vmatpush.msra.mxu0 0.0
    %1333 = vmatpush.msra.mxu0 0.0
    %1334 = vmatpush.msra.mxu0 0.0
    %1335 = vmatpush.msra.mxu0 0.0
    %1336 = vmatpush.msra.mxu0 0.0
    %1337 = vmatpush.msra.mxu0 0.0
    %1338 = vmatpush.msra.mxu0 0.0
    %1339 = vmatpush.msra.mxu0 0.0
    %1340 = vmatpush.msra.mxu0 0.0
    %1341 = vmatpush.msra.mxu0 %v1318
    %1342 = vmatpush.msra.mxu0 %v1316
    %1343 = vmatmul.f32.gmra.mxu0 %v1322
    %v1344 = vpop.f32.mrf.mxu0
    %v1345 = vadd.f32 0.0, %v1344
    %1346 = vmatmul.f32.gmra.mxu0 %v1325
    %v1347 = vpop.f32.mrf.mxu0
    %v1348 = vadd.f32 0.0, %v1347
    %1349 = vdwg.mxu0
    %1352 = vrot.lane.b32.xlu0 %v1145, 8
    %v1353 = vpop.permute.xlu0 %1352
    %1354 = vrot.lane.b32.xlu0 %v1148, 8
    %v1355 = vpop.permute.xlu0 %1354
    %1360 = vrot.lane.b32.xlu0 %v1245, 16
    %v1361 = vpop.permute.xlu0 %1360
    %1362 = vrot.lane.b32.xlu0 %v1248, 16
    %v1363 = vpop.permute.xlu0 %1362
    %1368 = vrot.lane.b32.xlu0 %v1345, 24
    %v1369 = vpop.permute.xlu0 %1368
    %1370 = vrot.lane.b32.xlu0 %v1348, 24
    %v1371 = vpop.permute.xlu0 %1370
    %v1374 = vsel %vm250, %v1045, %v1353
    %v1375 = vsel %vm250, %v1048, %v1355
    %v1376 = vsel %vm286, %v1374, %v1361
    %v1377 = vsel %vm286, %v1375, %v1363
    %v1378 = vsel %vm672, %v1376, %v1369
    %v1379 = vsel %vm672, %v1377, %v1371
    %s1380 = scalar_lea.vmem %s4, 32
    %v1381 = vld [vmem:[%s1380] sm:$0xff]
    %v1382 = vld [vmem:[%s1380 + $0x8] sm:$0xff]
    %v1383 = vld [vmem:[%s1380 + $0x10] sm:$0xff]
    %v1384 = vld [vmem:[%s1380 + $0x18] sm:$0xff]
    %s1385 = scalar_lea.vmem [#allocation7], 1
    %v1386 = vld [vmem:[%s1385] sm:$0x1]
    %v1388 = vperm.slane %v1386, 0
    %v1391 = vsel %vm138, %v1378, 0
    %v1394 = vsel %vm138, %v1379, 0
    %1396 = vmatpush.msra.mxu0 0.0
    %1397 = vmatpush.msra.mxu0 0.0
    %1398 = vmatpush.msra.mxu0 0.0
    %1399 = vmatpush.msra.mxu0 0.0
    %1400 = vmatpush.msra.mxu0 0.0
    %1401 = vmatpush.msra.mxu0 0.0
    %1402 = vmatpush.msra.mxu0 0.0
    %1403 = vmatpush.msra.mxu0 0.0
    %1404 = vmatpush.msra.mxu0 0.0
    %1405 = vmatpush.msra.mxu0 0.0
    %1406 = vmatpush.msra.mxu0 0.0
    %1407 = vmatpush.msra.mxu0 0.0
    %1408 = vmatpush.msra.mxu0 %v1384
    %1409 = vmatpush.msra.mxu0 %v1383
    %1410 = vmatpush.msra.mxu0 %v1382
    %1411 = vmatpush.msra.mxu0 %v1381
    %1412 = vmatmul.f32.gmra.mxu0 %v1391
    %v1413 = vpop.f32.mrf.mxu0
    %v1414 = vadd.f32 %v1388, %v1413
    %1415 = vmatmul.f32.gmra.mxu0 %v1394
    %v1416 = vpop.f32.mrf.mxu0
    %v1417 = vadd.f32 %v1388, %v1416
    %1418 = vdwg.mxu0
    %v1419 = vadd.f32 %v853, %v1414
    %v1420 = vadd.f32 %v854, %v1417
    %s1421 = scalar_lea.vmem %s12, 1
    %v1422 = vld [vmem:[%s1421] sm:$0x1]
    %s1423 = scalar_lea.vmem [#allocation10], 1
    %v1424 = vld [vmem:[%s1423] sm:$0x1]
    %v1425 = vsel %vm138, %v1419, 0.0
    %1426 = vadd.xlane.f32.xlu0 %v1425
    %v1427 = vpop.xlane.xlu0 %1426
    %v1428 = vsel %vm138, %v1420, 0.0
    %1429 = vadd.xlane.f32.xlu0 %v1428
    %v1430 = vpop.xlane.xlu0 %1429
    %v1431 = vmul.f32 %v1427, %v151
    %v1432 = vmul.f32 %v1430, %v151
    %v1433 = vsub.f32 %v1419, %v1431
    %v1434 = vsub.f32 %v1420, %v1432
    %v1435 = vmul.f32 %v1433, %v1433
    %v1436 = vmul.f32 %v1434, %v1434
    %v1437 = vsel %vm138, %v1435, 0.0
    %1438 = vadd.xlane.f32.xlu0 %v1437
    %v1439 = vpop.xlane.xlu0 %1438
    %v1440 = vsel %vm138, %v1436, 0.0
    %1441 = vadd.xlane.f32.xlu0 %v1440
    %v1442 = vpop.xlane.xlu0 %1441
    %v1443 = vmul.f32 %v1439, %v170
    %v1444 = vmul.f32 %v1442, %v170
    %v1445 = vadd.f32 %v1443, 1e-06
    %v1446 = vadd.f32 %v1444, 1e-06
    %v1447 = vrsqrt.pop %v1445
    %v1448 = vmul.f32 %v1447, %v1445
    %v1449 = vmul.f32 %v1448, %v1447
    %v1450 = vmul.f32 0.5, %v1449
    %v1451 = vsub.f32 1.5, %v1450
    %v1452 = vmul.f32 %v1447, %v1451
    %vm1453 = vweird.f32 %v1445
    %vm1454 = vweird.f32 %v1447
    %vm1455 = vmor %vm1453, %vm1454
    %v1456 = vsel %vm1455, %v1447, %v1452
    %v1457 = vrsqrt.pop %v1446
    %v1458 = vmul.f32 %v1457, %v1446
    %v1459 = vmul.f32 %v1458, %v1457
    %v1460 = vmul.f32 0.5, %v1459
    %v1461 = vsub.f32 1.5, %v1460
    %v1462 = vmul.f32 %v1457, %v1461
    %vm1463 = vweird.f32 %v1446
    %vm1464 = vweird.f32 %v1457
    %vm1465 = vmor %vm1463, %vm1464
    %v1466 = vsel %vm1465, %v1457, %v1462
    %v1467 = vmul.f32 %v1433, %v1456
    %v1468 = vmul.f32 %v1434, %v1466
    %v1470 = vperm.slane %v1422, 0
    %v1472 = vmul.f32 %v1470, %v1467
    %v1473 = vmul.f32 %v1470, %v1468
    %v1475 = vperm.slane %v1424, 0
    %v1477 = vadd.f32 %v1472, %v1475
    %v1478 = vadd.f32 %v1473, %v1475
    %s1479 = scalar_lea.vmem %s8, 32
    %v1480 = vld [vmem:[%s1479] sm:$0xff]
    %v1481 = vld [vmem:[%s1479 + $0x8] sm:$0xff]
    %v1482 = vld [vmem:[%s1479 + $0x10] sm:$0xff]
    %v1483 = vld [vmem:[%s1479 + $0x18] sm:$0xff]
    %s1484 = scalar_lea.vmem %s9, 1
    %v1485 = vld [vmem:[%s1484] sm:$0x1]
    %v1487 = vperm.slane %v1485, 0
    %v1490 = vsel %vm138, %v1477, 0
    %v1493 = vsel %vm138, %v1478, 0
    %1495 = vmatpush.msra.mxu0 0.0
    %1496 = vmatpush.msra.mxu0 0.0
    %1497 = vmatpush.msra.mxu0 0.0
    %1498 = vmatpush.msra.mxu0 0.0
    %1499 = vmatpush.msra.mxu0 0.0
    %1500 = vmatpush.msra.mxu0 0.0
    %1501 = vmatpush.msra.mxu0 0.0
    %1502 = vmatpush.msra.mxu0 0.0
    %1503 = vmatpush.msra.mxu0 0.0
    %1504 = vmatpush.msra.mxu0 0.0
    %1505 = vmatpush.msra.mxu0 0.0
    %1506 = vmatpush.msra.mxu0 0.0
    %1507 = vmatpush.msra.mxu0 %v1483
    %1508 = vmatpush.msra.mxu0 %v1482
    %1509 = vmatpush.msra.mxu0 %v1481
    %1510 = vmatpush.msra.mxu0 %v1480
    %1511 = vmatmul.f32.gmra.mxu0 %v1490
    %v1512 = vpop.f32.mrf.mxu0
    %v1513 = vadd.f32 %v1487, %v1512
    %1514 = vmatmul.f32.gmra.mxu0 %v1493
    %v1515 = vpop.f32.mrf.mxu0
    %v1516 = vadd.f32 %v1487, %v1515
    %1517 = vdwg.mxu0
    %v1518 = vmax.f32 %v1513, 0.0
    %v1519 = vmax.f32 %v1516, 0.0
    %s1520 = scalar_lea.vmem %s10, 64
    %v1521 = vld [vmem:[%s1520] sm:$0xff]
    %v1522 = vld [vmem:[%s1520 + $0x8] sm:$0xff]
    %v1523 = vld [vmem:[%s1520 + $0x10] sm:$0xff]
    %v1524 = vld [vmem:[%s1520 + $0x18] sm:$0xff]
    %v1525 = vld [vmem:[%s1520 + $0x20] sm:$0xff]
    %v1526 = vld [vmem:[%s1520 + $0x28] sm:$0xff]
    %v1527 = vld [vmem:[%s1520 + $0x30] sm:$0xff]
    %v1528 = vld [vmem:[%s1520 + $0x38] sm:$0xff]
    %v1530 = vsel %vm817, %v1518, 0
    %v1533 = vsel %vm817, %v1519, 0
    %1535 = vmatpush.msra.mxu0 0.0
    %1536 = vmatpush.msra.mxu0 0.0
    %1537 = vmatpush.msra.mxu0 0.0
    %1538 = vmatpush.msra.mxu0 0.0
    %1539 = vmatpush.msra.mxu0 0.0
    %1540 = vmatpush.msra.mxu0 0.0
    %1541 = vmatpush.msra.mxu0 0.0
    %1542 = vmatpush.msra.mxu0 0.0
    %1543 = vmatpush.msra.mxu0 %v1528
    %1544 = vmatpush.msra.mxu0 %v1527
    %1545 = vmatpush.msra.mxu0 %v1526
    %1546 = vmatpush.msra.mxu0 %v1525
    %1547 = vmatpush.msra.mxu0 %v1524
    %1548 = vmatpush.msra.mxu0 %v1523
    %1549 = vmatpush.msra.mxu0 %v1522
    %1550 = vmatpush.msra.mxu0 %v1521
    %1551 = vmatmul.f32.gmra.mxu0 %v1530
    %v1552 = vpop.f32.mrf.mxu0
    %v1553 = vadd.f32 0.0, %v1552
    %1554 = vmatmul.f32.gmra.mxu0 %v1533
    %v1555 = vpop.f32.mrf.mxu0
    %v1556 = vadd.f32 0.0, %v1555
    %1557 = vdwg.mxu0
    %v1558 = vadd.f32 %v1419, %v1553
    %v1559 = vadd.f32 %v1420, %v1556
    %s1560 = scalar_lea.vmem %s11, 1
    %v1561 = vld [vmem:[%s1560] sm:$0x1]
    %v1563 = vperm.slane %v1561, 0
    %v1565 = vadd.f32 %v1558, %v1563
    %v1566 = vadd.f32 %v1559, %v1563
    %v1567 = vld [vmem:[%s14] sm:$0x1]
    %v1568 = vld [vmem:[%s15] sm:$0x1]
    %v1569 = vsel %vm138, %v1565, 0.0
    %1570 = vadd.xlane.f32.xlu0 %v1569
    %v1571 = vpop.xlane.xlu0 %1570
    %v1572 = vsel %vm138, %v1566, 0.0
    %1573 = vadd.xlane.f32.xlu0 %v1572
    %v1574 = vpop.xlane.xlu0 %1573
    %v1575 = vmul.f32 %v1571, %v151
    %v1576 = vmul.f32 %v1574, %v151
    %v1577 = vsub.f32 %v1565, %v1575
    %v1578 = vsub.f32 %v1566, %v1576
    %v1579 = vmul.f32 %v1577, %v1577
    %v1580 = vmul.f32 %v1578, %v1578
    %v1581 = vsel %vm138, %v1579, 0.0
    %1582 = vadd.xlane.f32.xlu0 %v1581
    %v1583 = vpop.xlane.xlu0 %1582
    %v1584 = vsel %vm138, %v1580, 0.0
    %1585 = vadd.xlane.f32.xlu0 %v1584
    %v1586 = vpop.xlane.xlu0 %1585
    %v1587 = vmul.f32 %v1583, %v170
    %v1588 = vmul.f32 %v1586, %v170
    %v1589 = vadd.f32 %v1587, 1e-06
    %v1590 = vadd.f32 %v1588, 1e-06
    %v1591 = vrsqrt.pop %v1589
    %v1592 = vmul.f32 %v1591, %v1589
    %v1593 = vmul.f32 %v1592, %v1591
    %v1594 = vmul.f32 0.5, %v1593
    %v1595 = vsub.f32 1.5, %v1594
    %v1596 = vmul.f32 %v1591, %v1595
    %vm1597 = vweird.f32 %v1589
    %vm1598 = vweird.f32 %v1591
    %vm1599 = vmor %vm1597, %vm1598
    %v1600 = vsel %vm1599, %v1591, %v1596
    %v1601 = vrsqrt.pop %v1590
    %v1602 = vmul.f32 %v1601, %v1590
    %v1603 = vmul.f32 %v1602, %v1601
    %v1604 = vmul.f32 0.5, %v1603
    %v1605 = vsub.f32 1.5, %v1604
    %v1606 = vmul.f32 %v1601, %v1605
    %vm1607 = vweird.f32 %v1590
    %vm1608 = vweird.f32 %v1601
    %vm1609 = vmor %vm1607, %vm1608
    %v1610 = vsel %vm1609, %v1601, %v1606
    %v1611 = vmul.f32 %v1577, %v1600
    %v1612 = vmul.f32 %v1578, %v1610
    %v1614 = vperm.slane %v1567, 0
    %v1616 = vmul.f32 %v1614, %v1611
    %v1617 = vmul.f32 %v1614, %v1612
    %v1619 = vperm.slane %v1568, 0
    %v1621 = vadd.f32 %v1616, %v1619
    %v1622 = vadd.f32 %v1617, %v1619
    %1623 = vst.msk [vmem:[#allocation11] sm:$0xff] %vm138, %v1621
    %1624 = vst.msk [vmem:[#allocation11 + $0x8] sm:$0xff] %vm138, %v1622
    // Predicated region
    $region86: #{tpu_custom_call.1} parent=1 // pred_check
      _
    $region87: #{tpu_custom_call.1} parent=1 // pred_check_branch
      %1626 = sbr.rel (0) target = $region89
    $region88: #{tpu_custom_call.1} parent=1 // pred_region
      %1628 = vsyncadd [#allocation4], 0
      %s1629 = sshll.u32 [#allocation11], 4
      %s1630 = int_to_ptr.vmem [resolvable:$true] %s1629
      %s1631 = sshll.u32 %s16, 4
      %s1632 = int_to_ptr.hbm [resolvable:$true] %s1631
      %1637 = dma.vmem_to_hbm [thread:$0]  %s1630, 256, %s1632, [#allocation4], 128, 128, 8
    $region89: #{tpu_custom_call.1} parent=1 // pred_fallthru
      _
    // Predicated region
    $region90: #{tpu_custom_call.1} parent=1 // pred_check
      _
    $region91: #{tpu_custom_call.1} parent=1 // pred_check_branch
      %1639 = sbr.rel (0) target = $region93
    $region92: #{tpu_custom_call.1} parent=1 // pred_region
      %1641 = dma.done [#allocation4], 256
    $region93: #{tpu_custom_call.1} parent=1 // pred_fallthru
      _
    %1642 = vsyncpa [#allocation3], 1
    %1643 = vsyncpa [#allocation6], 1
    %1644 = vsyncpa [#allocation9], 1
    %1645 = vsyncpa [#allocation4], 1

</llo_original>
